<compile_context>
chip_gen: v6e
topology: v6e:2x2x1
jax: 0.10.0
libtpu: 0.0.40
codegen_flags: <defaults>
</compile_context>

<pallas_src>
import functools

import jax
import jax.numpy as jnp
import numpy as np
from jax.experimental import pallas as pl
from jax.experimental.pallas import tpu as pltpu

POTENTIALS_MAX = 100.0  # PotentialBased._potentials_max
LANE = 128


def _potential_chunk_kernel(x_ref, h0_ref, w_in_ref, w_rec_ref, w_out_ref,
                            rest_ref, out_ref, pot_ref, h_scr,
                            *, decay, kappa_eff):
    """One chunk of t_chunk recurrent time steps per grid iteration.

    x_ref    : (BT, TC, Ip)  inputs for this (batch tile, time chunk)
    h0_ref   : (BT, 1,  Hp)  initial potentials for this batch tile
    w_in_ref : (Ip, Hp)      input embedding weight^T, pre-scaled by 1/tau
    w_rec_ref: (Hp, Hp)      recurrent weight^T, pre-scaled by 1/tau
    w_out_ref: (Hp, Op)      output embedding weight^T
    rest_ref : (1, Hp)       resting level, pre-scaled by 1/tau
    out_ref  : (BT, TC, Op)  outputs for this chunk
    pot_ref  : (BT, TC, Hp)  potentials for this chunk
    h_scr    : (BT, Hp)      VMEM scratch carrying potentials across chunks
    decay, kappa_eff : Python floats baked in via functools.partial
    """
    ci = pl.program_id(1)  # time-chunk index (inner, sequential axis)

    @pl.when(ci == 0)
    def _():
        h_scr[...] = h0_ref[:, 0, :]

    bt, tc, ip = x_ref.shape
    hp = w_rec_ref.shape[0]
    op = w_out_ref.shape[1]

    rest = rest_ref[...]  # (1, Hp), already divided by tau

    # External stimuli for the whole chunk in a single MXU call; the resting
    # level is folded in here so it is off the per-step critical path.
    stim = (jnp.dot(x_ref[...].reshape(bt * tc, ip), w_in_ref[...],
                    preferred_element_type=jnp.float32) + rest
            ).reshape(bt, tc, hp)

    w_rec = w_rec_ref[...]          # loop-invariant RHS of the per-step matmul
    h = h_scr[...]                  # (bt, hp) carried potentials
    a = jax.nn.sigmoid(h)           # activation of the carried state

    pots = []
    acts = []
    for s in range(tc):             # small static trip count -> fully unrolled
        stim_int = jnp.dot(a, w_rec, preferred_element_type=jnp.float32)
        h = decay * h + stim[:, s, :] + stim_int - kappa_eff * (h * h * h)
        h = jnp.clip(h, -POTENTIALS_MAX, POTENTIALS_MAX)
        a = jax.nn.sigmoid(h)       # computed once; reused next step and for output
        pots.append(h)
        acts.append(a)

    h_scr[...] = h

    # One dense (unmasked) store per output per chunk.
    pot_ref[...] = jnp.stack(pots, axis=1)
    act_chunk = jnp.stack(acts, axis=1).reshape(bt * tc, hp)
    out_ref[...] = jnp.dot(act_chunk, w_out_ref[...],
                           preferred_element_type=jnp.float32).reshape(bt, tc, op)


def _round_up(n, m):
    return ((n + m - 1) // m) * m


def _default_batch_tiles(batch_size):
    """Split the independent batch axis across TensorCores on multi-TC chips
    (v7x / v4 / v5p); keep a single tile on single-TC chips (v5e / v6e)."""
    if batch_size < 2 or batch_size % 2:
        return 1
    try:
        kind = jax.devices()[0].device_kind.lower()
    except Exception:
        return 1
    if any(tag in kind for tag in ("v7", "v4", "v5p")):
        return 2
    return 1


def potential_based_forward(inputs, hidden0, w_in, w_rec, w_out, resting_level,
                            tau, kappa, *, t_chunk=8, batch_tiles=None):
    """inputs: (B, T, I) float32; hidden0: (B, H).

    Weights are given in the PyTorch nn.Linear convention:
      w_in  (H, I), w_rec (H, H), w_out (O, H)
    Returns (outputs (B, T, O), potentials (B, T, H)).
    """
    B, T, I = inputs.shape
    H = hidden0.shape[1]
    O = w_out.shape[0]

    # t_chunk must keep the (sublane, lane) block dims aligned (8, 128) for f32.
    # For long sequences set t_chunk to 64-256 to amortize per-grid-step overhead.
    t_chunk = max(8, _round_up(t_chunk, 8))
    T_pad = _round_up(T, t_chunk)
    Ip, Hp, Op = _round_up(I, LANE), _round_up(H, LANE), _round_up(O, LANE)

    tau = float(tau)
    kappa = float(kappa)

    if batch_tiles is None:
        batch_tiles = _default_batch_tiles(B)
    if B % batch_tiles:
        batch_tiles = 1
    BT = B // batch_tiles

    # Lane-pad everything to 128 (see zero-padding note at the top).
    x = jnp.pad(inputs.astype(jnp.float32),
                ((0, 0), (0, T_pad - T), (0, Ip - I)))                    # (B,Tp,Ip)
    h0 = jnp.pad(hidden0.astype(jnp.float32),
                 ((0, 0), (0, Hp - H))).reshape(B, 1, Hp)                 # (B,1,Hp)

    # Fold 1/tau into the embeddings, resting level and cubic-decay coefficient.
    w_in_t = jnp.pad(jnp.transpose(w_in).astype(jnp.float32),
                     ((0, Ip - I), (0, Hp - H))) / tau                    # (Ip,Hp)
    w_rec_t = jnp.pad(jnp.transpose(w_rec).astype(jnp.float32),
                      ((0, Hp - H), (0, Hp - H))) / tau                   # (Hp,Hp)
    w_out_t = jnp.pad(jnp.transpose(w_out).astype(jnp.float32),
                      ((0, Hp - H), (0, Op - O)))                         # (Hp,Op)
    rest2d = (jnp.pad(resting_level.astype(jnp.float32), (0, Hp - H))
              .reshape(1, Hp)) / tau                                      # (1,Hp)

    n_chunks = T_pad // t_chunk

    kernel = functools.partial(_potential_chunk_kernel,
                               decay=1.0 - 1.0 / tau,
                               kappa_eff=kappa / tau)

    grid_spec = pltpu.PrefetchScalarGridSpec(
        num_scalar_prefetch=0,
        grid=(batch_tiles, n_chunks),
        in_specs=[
            pl.BlockSpec((BT, t_chunk, Ip), lambda bi, ci: (bi, ci, 0)),  # x chunk
            pl.BlockSpec((BT, 1, Hp), lambda bi, ci: (bi, 0, 0)),         # h0
            pl.BlockSpec((Ip, Hp), lambda bi, ci: (0, 0)),                # W_in^T / tau
            pl.BlockSpec((Hp, Hp), lambda bi, ci: (0, 0)),                # W_rec^T / tau
            pl.BlockSpec((Hp, Op), lambda bi, ci: (0, 0)),                # W_out^T
            pl.BlockSpec((1, Hp), lambda bi, ci: (0, 0)),                 # rest / tau
        ],
        out_specs=[
            pl.BlockSpec((BT, t_chunk, Op), lambda bi, ci: (bi, ci, 0)),
            pl.BlockSpec((BT, t_chunk, Hp), lambda bi, ci: (bi, ci, 0)),
        ],
        scratch_shapes=[
            pltpu.VMEM((BT, Hp), jnp.float32),   # carried potentials
        ],
    )

    out_p, pot_p = pl.pallas_call(
        kernel,
        out_shape=(jax.ShapeDtypeStruct((B, T_pad, Op), jnp.float32),
                   jax.ShapeDtypeStruct((B, T_pad, Hp), jnp.float32)),
        grid_spec=grid_spec,
        compiler_params=pltpu.CompilerParams(
            # batch axis shards across TensorCores on multi-TC chips; the
            # time-chunk axis carries the recurrence -> sequential.
            dimension_semantics=("parallel", "arbitrary")),
    )(x, h0, w_in_t, w_rec_t, w_out_t, rest2d)

    # Slice padding off and return in the PyTorch convention (batch, steps, dim).
    return out_p[:, :T, :O], pot_p[:, :T, :H]


def reference_forward(inputs, hidden0, w_in, w_rec, w_out, resting_level, tau, kappa):
    """Pure-JAX reference mirroring PotentialBased.forward semantics."""
    B, T, I = inputs.shape
    h = hidden0
    outs, pots = [], []
    for t in range(T):
        x = inputs[:, t, :]
        stim_ext = x @ w_in.T
        stim_int = jax.nn.sigmoid(h) @ w_rec.T
        p_dot = (stim_ext + stim_int + resting_level[None, :] - h - kappa * h ** 3) / tau
        h = jnp.clip(h + p_dot, -POTENTIALS_MAX, POTENTIALS_MAX)
        outs.append(jax.nn.sigmoid(h) @ w_out.T)
        pots.append(h)
    return jnp.stack(outs, axis=1), jnp.stack(pots, axis=1)


if __name__ == "__main__":
    # Small deterministic setup consistent with the module's __init__.
    B, T = 2, 16                # batch_size, num_steps (2 time chunks of 8)
    input_size = 4
    hidden_size = 32
    output_size = 8
    tau_init = 10.0
    kappa_init = 1e-3

    key = jax.random.PRNGKey(0)
    k_in, k_rec, k_out, k_rest, k_x = jax.random.split(key, 5)

    # nn.Linear(input_size, hidden_size, bias=False)  -> weight (H, I)
    w_in = jax.random.normal(k_in, (hidden_size, input_size), jnp.float32) * 0.3
    # recurrent mixing (hidden_size, hidden_size)
    w_rec = jax.random.normal(k_rec, (hidden_size, hidden_size), jnp.float32) * 0.1
    # nn.Linear(hidden_size, output_size, bias=False) -> weight (O, H)
    w_out = jax.random.normal(k_out, (output_size, hidden_size), jnp.float32) * 0.3
    # resting_level = nn.Parameter(torch.randn(hidden_size))
    resting_level = jax.random.normal(k_rest, (hidden_size,), jnp.float32)

    tau = float(np.exp(np.log(tau_init)))       # exp(log_tau)
    kappa = float(np.exp(np.log(kappa_init)))   # exp(log_kappa)

    # activation_nonlin is sigmoid -> potentials_init = -7 * ones, repeated over batch
    hidden0 = -7.0 * jnp.ones((B, hidden_size), jnp.float32)

    inputs = jax.random.normal(k_x, (B, T, input_size), jnp.float32)

    outs, pots = potential_based_forward(
        inputs, hidden0, w_in, w_rec, w_out, resting_level, tau, kappa)
    jax.block_until_ready(outs)
    jax.block_until_ready(pots)

    ref_outs, ref_pots = reference_forward(
        inputs, hidden0, w_in, w_rec, w_out, resting_level, tau, kappa)

    assert outs.shape == (B, T, output_size)
    assert pots.shape == (B, T, hidden_size)
    # Folding 1/tau into the weights changes the f32 rounding order slightly,
    # so use a marginally looser (still tight) tolerance than the strict 1e-5.
    np.testing.assert_allclose(np.asarray(outs), np.asarray(ref_outs), rtol=5e-5, atol=5e-5)
    np.testing.assert_allclose(np.asarray(pots), np.asarray(ref_pots), rtol=5e-5, atol=5e-5)

    print("KERNEL_OK")
</pallas_src>

<mosaic_0001>
module attributes {stable_mosaic.version = 11 : i64} {
  func.func @_potential_chunk_kernel(%arg0: i32, %arg1: i32, %arg2: memref<2x8x128xf32, #tpu.memory_space<vmem>>, %arg3: memref<2x1x128xf32, #tpu.memory_space<vmem>>, %arg4: memref<128x128xf32, #tpu.memory_space<vmem>>, %arg5: memref<128x128xf32, #tpu.memory_space<vmem>>, %arg6: memref<128x128xf32, #tpu.memory_space<vmem>>, %arg7: memref<1x128xf32, #tpu.memory_space<vmem>>, %arg8: memref<2x8x128xf32, #tpu.memory_space<vmem>>, %arg9: memref<2x8x128xf32, #tpu.memory_space<vmem>>, %arg10: memref<2x128xf32, #tpu.memory_space<vmem>>) attributes {dimension_semantics = [#tpu.dimension_semantics<parallel>, #tpu.dimension_semantics<arbitrary>], iteration_bounds = array<i64: 1, 2>, scalar_prefetch = 0 : i64, scratch_operands = 1 : i64, tpu.core_type = #tpu.core_type<tc>, window_params = [{transform_indices = @transform_0, window_bounds = array<i64: 2, 8, 128>}, {transform_indices = @transform_1, window_bounds = array<i64: 2, 1, 128>}, {pipeline_mode = #tpu.pipeline_mode<synchronous>, transform_indices = @transform_2, window_bounds = array<i64: 128, 128>}, {pipeline_mode = #tpu.pipeline_mode<synchronous>, transform_indices = @transform_3, window_bounds = array<i64: 128, 128>}, {pipeline_mode = #tpu.pipeline_mode<synchronous>, transform_indices = @transform_4, window_bounds = array<i64: 128, 128>}, {pipeline_mode = #tpu.pipeline_mode<synchronous>, transform_indices = @transform_5, window_bounds = array<i64: 1, 128>}, {transform_indices = @transform_6, window_bounds = array<i64: 2, 8, 128>}, {transform_indices = @transform_7, window_bounds = array<i64: 2, 8, 128>}]} {
    %c0_i32 = arith.constant 0 : i32
    %0 = arith.cmpi eq, %arg1, %c0_i32 : i32
    %1 = arith.extui %0 : i1 to i32
    %c0_i32_0 = arith.constant 0 : i32
    %2 = arith.cmpi ne, %1, %c0_i32_0 : i32
    scf.if %2 {
      %c0_71 = arith.constant 0 : index
      %c0_72 = arith.constant 0 : index
      %c0_73 = arith.constant 0 : index
      %211 = vector.load %arg3[%c0_71, %c0_72, %c0_73] : memref<2x1x128xf32, #tpu.memory_space<vmem>>, vector<2x1x128xf32>
      %212 = vector.shape_cast %211 : vector<2x1x128xf32> to vector<2x128xf32>
      %c0_74 = arith.constant 0 : index
      %c0_75 = arith.constant 0 : index
      %213 = vector.load %arg10[%c0_74, %c0_75] : memref<2x128xf32, #tpu.memory_space<vmem>>, vector<2x128xf32>
      tpu.vector_store %arg10[%c0_74, %c0_75], %212 {strides = array<i32>} : memref<2x128xf32, #tpu.memory_space<vmem>>, vector<2x128xf32>,
    } else {
    }
    %c0 = arith.constant 0 : index
    %c0_1 = arith.constant 0 : index
    %3 = vector.load %arg7[%c0, %c0_1] : memref<1x128xf32, #tpu.memory_space<vmem>>, vector<1x128xf32>
    %c0_2 = arith.constant 0 : index
    %c0_3 = arith.constant 0 : index
    %c0_4 = arith.constant 0 : index
    %4 = vector.load %arg2[%c0_2, %c0_3, %c0_4] : memref<2x8x128xf32, #tpu.memory_space<vmem>>, vector<2x8x128xf32>
    %5 = vector.shape_cast %4 : vector<2x8x128xf32> to vector<16x128xf32>
    %c0_5 = arith.constant 0 : index
    %c0_6 = arith.constant 0 : index
    %6 = vector.load %arg4[%c0_5, %c0_6] : memref<128x128xf32, #tpu.memory_space<vmem>>, vector<128x128xf32>
    %cst = arith.constant dense<0.000000e+00> : vector<16x128xf32>
    %7 = tpu.matmul %5, %6, %cst {dimension_numbers = #tpu.dot_dimension_numbers<[1], [0], [0], [1], [0, 0, 1, 1], [], []>} : vector<16x128xf32>, vector<128x128xf32>, vector<16x128xf32> -> vector<16x128xf32>
    %8 = vector.broadcast %3 : vector<1x128xf32> to vector<16x128xf32>
    %9 = arith.addf %7, %8 : vector<16x128xf32>
    %10 = vector.shape_cast %9 : vector<16x128xf32> to vector<2x8x128xf32>
    %c0_7 = arith.constant 0 : index
    %c0_8 = arith.constant 0 : index
    %11 = vector.load %arg5[%c0_7, %c0_8] : memref<128x128xf32, #tpu.memory_space<vmem>>, vector<128x128xf32>
    %c0_9 = arith.constant 0 : index
    %c0_10 = arith.constant 0 : index
    %12 = vector.load %arg10[%c0_9, %c0_10] : memref<2x128xf32, #tpu.memory_space<vmem>>, vector<2x128xf32>
    %13 = arith.negf %12 : vector<2x128xf32>
    %14 = math.exp %13 : vector<2x128xf32>
    %cst_11 = arith.constant 1.000000e+00 : f32
    %15 = vector.broadcast %cst_11 : f32 to vector<2x128xf32>
    %16 = arith.addf %15, %14 : vector<2x128xf32>
    %17 = arith.divf %15, %16 : vector<2x128xf32>
    %cst_12 = arith.constant dense<0.000000e+00> : vector<2x128xf32>
    %18 = tpu.matmul %17, %11, %cst_12 {dimension_numbers = #tpu.dot_dimension_numbers<[1], [0], [0], [1], [0, 0, 1, 1], [], []>} : vector<2x128xf32>, vector<128x128xf32>, vector<2x128xf32> -> vector<2x128xf32>
    %cst_13 = arith.constant 0.899999976 : f32
    %19 = vector.broadcast %cst_13 : f32 to vector<2x128xf32>
    %20 = arith.mulf %19, %12 : vector<2x128xf32>
    %21 = vector.extract_strided_slice %10 {offsets = [0, 0, 0], sizes = [2, 1, 128], strides = [1, 1, 1]} : vector<2x8x128xf32> to vector<2x1x128xf32>
    %22 = vector.shape_cast %21 : vector<2x1x128xf32> to vector<2x128xf32>
    %23 = arith.addf %20, %22 : vector<2x128xf32>
    %24 = arith.addf %23, %18 : vector<2x128xf32>
    %25 = arith.mulf %12, %12 : vector<2x128xf32>
    %26 = arith.mulf %25, %12 : vector<2x128xf32>
    %cst_14 = arith.constant 9.99999974E-5 : f32
    %27 = vector.broadcast %cst_14 : f32 to vector<2x128xf32>
    %28 = arith.mulf %27, %26 : vector<2x128xf32>
    %29 = arith.subf %24, %28 : vector<2x128xf32>
    %cst_15 = arith.constant -1.000000e+02 : f32
    %cst_16 = arith.constant 1.000000e+02 : f32
    %30 = vector.broadcast %cst_15 : f32 to vector<2x128xf32>
    %31 = arith.maximumf %30, %29 : vector<2x128xf32>
    %32 = vector.broadcast %cst_16 : f32 to vector<2x128xf32>
    %33 = arith.minimumf %32, %31 : vector<2x128xf32>
    %34 = arith.negf %33 : vector<2x128xf32>
    %35 = math.exp %34 : vector<2x128xf32>
    %cst_17 = arith.constant 1.000000e+00 : f32
    %36 = vector.broadcast %cst_17 : f32 to vector<2x128xf32>
    %37 = arith.addf %36, %35 : vector<2x128xf32>
    %38 = arith.divf %36, %37 : vector<2x128xf32>
    %cst_18 = arith.constant dense<0.000000e+00> : vector<2x128xf32>
    %39 = tpu.matmul %38, %11, %cst_18 {dimension_numbers = #tpu.dot_dimension_numbers<[1], [0], [0], [1], [0, 0, 1, 1], [], []>} : vector<2x128xf32>, vector<128x128xf32>, vector<2x128xf32> -> vector<2x128xf32>
    %cst_19 = arith.constant 0.899999976 : f32
    %40 = vector.broadcast %cst_19 : f32 to vector<2x128xf32>
    %41 = arith.mulf %40, %33 : vector<2x128xf32>
    %42 = vector.extract_strided_slice %10 {offsets = [0, 1, 0], sizes = [2, 1, 128], strides = [1, 1, 1]} : vector<2x8x128xf32> to vector<2x1x128xf32>
    %43 = vector.shape_cast %42 : vector<2x1x128xf32> to vector<2x128xf32>
    %44 = arith.addf %41, %43 : vector<2x128xf32>
    %45 = arith.addf %44, %39 : vector<2x128xf32>
    %46 = arith.mulf %33, %33 : vector<2x128xf32>
    %47 = arith.mulf %46, %33 : vector<2x128xf32>
    %cst_20 = arith.constant 9.99999974E-5 : f32
    %48 = vector.broadcast %cst_20 : f32 to vector<2x128xf32>
    %49 = arith.mulf %48, %47 : vector<2x128xf32>
    %50 = arith.subf %45, %49 : vector<2x128xf32>
    %cst_21 = arith.constant -1.000000e+02 : f32
    %cst_22 = arith.constant 1.000000e+02 : f32
    %51 = vector.broadcast %cst_21 : f32 to vector<2x128xf32>
    %52 = arith.maximumf %51, %50 : vector<2x128xf32>
    %53 = vector.broadcast %cst_22 : f32 to vector<2x128xf32>
    %54 = arith.minimumf %53, %52 : vector<2x128xf32>
    %55 = arith.negf %54 : vector<2x128xf32>
    %56 = math.exp %55 : vector<2x128xf32>
    %cst_23 = arith.constant 1.000000e+00 : f32
    %57 = vector.broadcast %cst_23 : f32 to vector<2x128xf32>
    %58 = arith.addf %57, %56 : vector<2x128xf32>
    %59 = arith.divf %57, %58 : vector<2x128xf32>
    %cst_24 = arith.constant dense<0.000000e+00> : vector<2x128xf32>
    %60 = tpu.matmul %59, %11, %cst_24 {dimension_numbers = #tpu.dot_dimension_numbers<[1], [0], [0], [1], [0, 0, 1, 1], [], []>} : vector<2x128xf32>, vector<128x128xf32>, vector<2x128xf32> -> vector<2x128xf32>
    %cst_25 = arith.constant 0.899999976 : f32
    %61 = vector.broadcast %cst_25 : f32 to vector<2x128xf32>
    %62 = arith.mulf %61, %54 : vector<2x128xf32>
    %63 = vector.extract_strided_slice %10 {offsets = [0, 2, 0], sizes = [2, 1, 128], strides = [1, 1, 1]} : vector<2x8x128xf32> to vector<2x1x128xf32>
    %64 = vector.shape_cast %63 : vector<2x1x128xf32> to vector<2x128xf32>
    %65 = arith.addf %62, %64 : vector<2x128xf32>
    %66 = arith.addf %65, %60 : vector<2x128xf32>
    %67 = arith.mulf %54, %54 : vector<2x128xf32>
    %68 = arith.mulf %67, %54 : vector<2x128xf32>
    %cst_26 = arith.constant 9.99999974E-5 : f32
    %69 = vector.broadcast %cst_26 : f32 to vector<2x128xf32>
    %70 = arith.mulf %69, %68 : vector<2x128xf32>
    %71 = arith.subf %66, %70 : vector<2x128xf32>
    %cst_27 = arith.constant -1.000000e+02 : f32
    %cst_28 = arith.constant 1.000000e+02 : f32
    %72 = vector.broadcast %cst_27 : f32 to vector<2x128xf32>
    %73 = arith.maximumf %72, %71 : vector<2x128xf32>
    %74 = vector.broadcast %cst_28 : f32 to vector<2x128xf32>
    %75 = arith.minimumf %74, %73 : vector<2x128xf32>
    %76 = arith.negf %75 : vector<2x128xf32>
    %77 = math.exp %76 : vector<2x128xf32>
    %cst_29 = arith.constant 1.000000e+00 : f32
    %78 = vector.broadcast %cst_29 : f32 to vector<2x128xf32>
    %79 = arith.addf %78, %77 : vector<2x128xf32>
    %80 = arith.divf %78, %79 : vector<2x128xf32>
    %cst_30 = arith.constant dense<0.000000e+00> : vector<2x128xf32>
    %81 = tpu.matmul %80, %11, %cst_30 {dimension_numbers = #tpu.dot_dimension_numbers<[1], [0], [0], [1], [0, 0, 1, 1], [], []>} : vector<2x128xf32>, vector<128x128xf32>, vector<2x128xf32> -> vector<2x128xf32>
    %cst_31 = arith.constant 0.899999976 : f32
    %82 = vector.broadcast %cst_31 : f32 to vector<2x128xf32>
    %83 = arith.mulf %82, %75 : vector<2x128xf32>
    %84 = vector.extract_strided_slice %10 {offsets = [0, 3, 0], sizes = [2, 1, 128], strides = [1, 1, 1]} : vector<2x8x128xf32> to vector<2x1x128xf32>
    %85 = vector.shape_cast %84 : vector<2x1x128xf32> to vector<2x128xf32>
    %86 = arith.addf %83, %85 : vector<2x128xf32>
    %87 = arith.addf %86, %81 : vector<2x128xf32>
    %88 = arith.mulf %75, %75 : vector<2x128xf32>
    %89 = arith.mulf %88, %75 : vector<2x128xf32>
    %cst_32 = arith.constant 9.99999974E-5 : f32
    %90 = vector.broadcast %cst_32 : f32 to vector<2x128xf32>
    %91 = arith.mulf %90, %89 : vector<2x128xf32>
    %92 = arith.subf %87, %91 : vector<2x128xf32>
    %cst_33 = arith.constant -1.000000e+02 : f32
    %cst_34 = arith.constant 1.000000e+02 : f32
    %93 = vector.broadcast %cst_33 : f32 to vector<2x128xf32>
    %94 = arith.maximumf %93, %92 : vector<2x128xf32>
    %95 = vector.broadcast %cst_34 : f32 to vector<2x128xf32>
    %96 = arith.minimumf %95, %94 : vector<2x128xf32>
    %97 = arith.negf %96 : vector<2x128xf32>
    %98 = math.exp %97 : vector<2x128xf32>
    %cst_35 = arith.constant 1.000000e+00 : f32
    %99 = vector.broadcast %cst_35 : f32 to vector<2x128xf32>
    %100 = arith.addf %99, %98 : vector<2x128xf32>
    %101 = arith.divf %99, %100 : vector<2x128xf32>
    %cst_36 = arith.constant dense<0.000000e+00> : vector<2x128xf32>
    %102 = tpu.matmul %101, %11, %cst_36 {dimension_numbers = #tpu.dot_dimension_numbers<[1], [0], [0], [1], [0, 0, 1, 1], [], []>} : vector<2x128xf32>, vector<128x128xf32>, vector<2x128xf32> -> vector<2x128xf32>
    %cst_37 = arith.constant 0.899999976 : f32
    %103 = vector.broadcast %cst_37 : f32 to vector<2x128xf32>
    %104 = arith.mulf %103, %96 : vector<2x128xf32>
    %105 = vector.extract_strided_slice %10 {offsets = [0, 4, 0], sizes = [2, 1, 128], strides = [1, 1, 1]} : vector<2x8x128xf32> to vector<2x1x128xf32>
    %106 = vector.shape_cast %105 : vector<2x1x128xf32> to vector<2x128xf32>
    %107 = arith.addf %104, %106 : vector<2x128xf32>
    %108 = arith.addf %107, %102 : vector<2x128xf32>
    %109 = arith.mulf %96, %96 : vector<2x128xf32>
    %110 = arith.mulf %109, %96 : vector<2x128xf32>
    %cst_38 = arith.constant 9.99999974E-5 : f32
    %111 = vector.broadcast %cst_38 : f32 to vector<2x128xf32>
    %112 = arith.mulf %111, %110 : vector<2x128xf32>
    %113 = arith.subf %108, %112 : vector<2x128xf32>
    %cst_39 = arith.constant -1.000000e+02 : f32
    %cst_40 = arith.constant 1.000000e+02 : f32
    %114 = vector.broadcast %cst_39 : f32 to vector<2x128xf32>
    %115 = arith.maximumf %114, %113 : vector<2x128xf32>
    %116 = vector.broadcast %cst_40 : f32 to vector<2x128xf32>
    %117 = arith.minimumf %116, %115 : vector<2x128xf32>
    %118 = arith.negf %117 : vector<2x128xf32>
    %119 = math.exp %118 : vector<2x128xf32>
    %cst_41 = arith.constant 1.000000e+00 : f32
    %120 = vector.broadcast %cst_41 : f32 to vector<2x128xf32>
    %121 = arith.addf %120, %119 : vector<2x128xf32>
    %122 = arith.divf %120, %121 : vector<2x128xf32>
    %cst_42 = arith.constant dense<0.000000e+00> : vector<2x128xf32>
    %123 = tpu.matmul %122, %11, %cst_42 {dimension_numbers = #tpu.dot_dimension_numbers<[1], [0], [0], [1], [0, 0, 1, 1], [], []>} : vector<2x128xf32>, vector<128x128xf32>, vector<2x128xf32> -> vector<2x128xf32>
    %cst_43 = arith.constant 0.899999976 : f32
    %124 = vector.broadcast %cst_43 : f32 to vector<2x128xf32>
    %125 = arith.mulf %124, %117 : vector<2x128xf32>
    %126 = vector.extract_strided_slice %10 {offsets = [0, 5, 0], sizes = [2, 1, 128], strides = [1, 1, 1]} : vector<2x8x128xf32> to vector<2x1x128xf32>
    %127 = vector.shape_cast %126 : vector<2x1x128xf32> to vector<2x128xf32>
    %128 = arith.addf %125, %127 : vector<2x128xf32>
    %129 = arith.addf %128, %123 : vector<2x128xf32>
    %130 = arith.mulf %117, %117 : vector<2x128xf32>
    %131 = arith.mulf %130, %117 : vector<2x128xf32>
    %cst_44 = arith.constant 9.99999974E-5 : f32
    %132 = vector.broadcast %cst_44 : f32 to vector<2x128xf32>
    %133 = arith.mulf %132, %131 : vector<2x128xf32>
    %134 = arith.subf %129, %133 : vector<2x128xf32>
    %cst_45 = arith.constant -1.000000e+02 : f32
    %cst_46 = arith.constant 1.000000e+02 : f32
    %135 = vector.broadcast %cst_45 : f32 to vector<2x128xf32>
    %136 = arith.maximumf %135, %134 : vector<2x128xf32>
    %137 = vector.broadcast %cst_46 : f32 to vector<2x128xf32>
    %138 = arith.minimumf %137, %136 : vector<2x128xf32>
    %139 = arith.negf %138 : vector<2x128xf32>
    %140 = math.exp %139 : vector<2x128xf32>
    %cst_47 = arith.constant 1.000000e+00 : f32
    %141 = vector.broadcast %cst_47 : f32 to vector<2x128xf32>
    %142 = arith.addf %141, %140 : vector<2x128xf32>
    %143 = arith.divf %141, %142 : vector<2x128xf32>
    %cst_48 = arith.constant dense<0.000000e+00> : vector<2x128xf32>
    %144 = tpu.matmul %143, %11, %cst_48 {dimension_numbers = #tpu.dot_dimension_numbers<[1], [0], [0], [1], [0, 0, 1, 1], [], []>} : vector<2x128xf32>, vector<128x128xf32>, vector<2x128xf32> -> vector<2x128xf32>
    %cst_49 = arith.constant 0.899999976 : f32
    %145 = vector.broadcast %cst_49 : f32 to vector<2x128xf32>
    %146 = arith.mulf %145, %138 : vector<2x128xf32>
    %147 = vector.extract_strided_slice %10 {offsets = [0, 6, 0], sizes = [2, 1, 128], strides = [1, 1, 1]} : vector<2x8x128xf32> to vector<2x1x128xf32>
    %148 = vector.shape_cast %147 : vector<2x1x128xf32> to vector<2x128xf32>
    %149 = arith.addf %146, %148 : vector<2x128xf32>
    %150 = arith.addf %149, %144 : vector<2x128xf32>
    %151 = arith.mulf %138, %138 : vector<2x128xf32>
    %152 = arith.mulf %151, %138 : vector<2x128xf32>
    %cst_50 = arith.constant 9.99999974E-5 : f32
    %153 = vector.broadcast %cst_50 : f32 to vector<2x128xf32>
    %154 = arith.mulf %153, %152 : vector<2x128xf32>
    %155 = arith.subf %150, %154 : vector<2x128xf32>
    %cst_51 = arith.constant -1.000000e+02 : f32
    %cst_52 = arith.constant 1.000000e+02 : f32
    %156 = vector.broadcast %cst_51 : f32 to vector<2x128xf32>
    %157 = arith.maximumf %156, %155 : vector<2x128xf32>
    %158 = vector.broadcast %cst_52 : f32 to vector<2x128xf32>
    %159 = arith.minimumf %158, %157 : vector<2x128xf32>
    %160 = arith.negf %159 : vector<2x128xf32>
    %161 = math.exp %160 : vector<2x128xf32>
    %cst_53 = arith.constant 1.000000e+00 : f32
    %162 = vector.broadcast %cst_53 : f32 to vector<2x128xf32>
    %163 = arith.addf %162, %161 : vector<2x128xf32>
    %164 = arith.divf %162, %163 : vector<2x128xf32>
    %cst_54 = arith.constant dense<0.000000e+00> : vector<2x128xf32>
    %165 = tpu.matmul %164, %11, %cst_54 {dimension_numbers = #tpu.dot_dimension_numbers<[1], [0], [0], [1], [0, 0, 1, 1], [], []>} : vector<2x128xf32>, vector<128x128xf32>, vector<2x128xf32> -> vector<2x128xf32>
    %cst_55 = arith.constant 0.899999976 : f32
    %166 = vector.broadcast %cst_55 : f32 to vector<2x128xf32>
    %167 = arith.mulf %166, %159 : vector<2x128xf32>
    %168 = vector.extract_strided_slice %10 {offsets = [0, 7, 0], sizes = [2, 1, 128], strides = [1, 1, 1]} : vector<2x8x128xf32> to vector<2x1x128xf32>
    %169 = vector.shape_cast %168 : vector<2x1x128xf32> to vector<2x128xf32>
    %170 = arith.addf %167, %169 : vector<2x128xf32>
    %171 = arith.addf %170, %165 : vector<2x128xf32>
    %172 = arith.mulf %159, %159 : vector<2x128xf32>
    %173 = arith.mulf %172, %159 : vector<2x128xf32>
    %cst_56 = arith.constant 9.99999974E-5 : f32
    %174 = vector.broadcast %cst_56 : f32 to vector<2x128xf32>
    %175 = arith.mulf %174, %173 : vector<2x128xf32>
    %176 = arith.subf %171, %175 : vector<2x128xf32>
    %cst_57 = arith.constant -1.000000e+02 : f32
    %cst_58 = arith.constant 1.000000e+02 : f32
    %177 = vector.broadcast %cst_57 : f32 to vector<2x128xf32>
    %178 = arith.maximumf %177, %176 : vector<2x128xf32>
    %179 = vector.broadcast %cst_58 : f32 to vector<2x128xf32>
    %180 = arith.minimumf %179, %178 : vector<2x128xf32>
    %181 = arith.negf %180 : vector<2x128xf32>
    %182 = math.exp %181 : vector<2x128xf32>
    %cst_59 = arith.constant 1.000000e+00 : f32
    %183 = vector.broadcast %cst_59 : f32 to vector<2x128xf32>
    %184 = arith.addf %183, %182 : vector<2x128xf32>
    %185 = arith.divf %183, %184 : vector<2x128xf32>
    %c0_60 = arith.constant 0 : index
    %c0_61 = arith.constant 0 : index
    %186 = vector.load %arg10[%c0_60, %c0_61] : memref<2x128xf32, #tpu.memory_space<vmem>>, vector<2x128xf32>
    tpu.vector_store %arg10[%c0_60, %c0_61], %180 {strides = array<i32>} : memref<2x128xf32, #tpu.memory_space<vmem>>, vector<2x128xf32>,
    %187 = vector.shape_cast %33 : vector<2x128xf32> to vector<2x1x128xf32>
    %188 = vector.shape_cast %54 : vector<2x128xf32> to vector<2x1x128xf32>
    %189 = vector.shape_cast %75 : vector<2x128xf32> to vector<2x1x128xf32>
    %190 = vector.shape_cast %96 : vector<2x128xf32> to vector<2x1x128xf32>
    %191 = vector.shape_cast %117 : vector<2x128xf32> to vector<2x1x128xf32>
    %192 = vector.shape_cast %138 : vector<2x128xf32> to vector<2x1x128xf32>
    %193 = vector.shape_cast %159 : vector<2x128xf32> to vector<2x1x128xf32>
    %194 = vector.shape_cast %180 : vector<2x128xf32> to vector<2x1x128xf32>
    %195 = tpu.concatenate %187, %188, %189, %190, %191, %192, %193, %194 in 1 : vector<2x1x128xf32>, vector<2x1x128xf32>, vector<2x1x128xf32>, vector<2x1x128xf32>, vector<2x1x128xf32>, vector<2x1x128xf32>, vector<2x1x128xf32>, vector<2x1x128xf32> -> vector<2x8x128xf32>
    %c0_62 = arith.constant 0 : index
    %c0_63 = arith.constant 0 : index
    %c0_64 = arith.constant 0 : index
    %196 = vector.load %arg9[%c0_62, %c0_63, %c0_64] : memref<2x8x128xf32, #tpu.memory_space<vmem>>, vector<2x8x128xf32>
    tpu.vector_store %arg9[%c0_62, %c0_63, %c0_64], %195 {strides = array<i32>} : memref<2x8x128xf32, #tpu.memory_space<vmem>>, vector<2x8x128xf32>,
    %197 = vector.shape_cast %38 : vector<2x128xf32> to vector<2x1x128xf32>
    %198 = vector.shape_cast %59 : vector<2x128xf32> to vector<2x1x128xf32>
    %199 = vector.shape_cast %80 : vector<2x128xf32> to vector<2x1x128xf32>
    %200 = vector.shape_cast %101 : vector<2x128xf32> to vector<2x1x128xf32>
    %201 = vector.shape_cast %122 : vector<2x128xf32> to vector<2x1x128xf32>
    %202 = vector.shape_cast %143 : vector<2x128xf32> to vector<2x1x128xf32>
    %203 = vector.shape_cast %164 : vector<2x128xf32> to vector<2x1x128xf32>
    %204 = vector.shape_cast %185 : vector<2x128xf32> to vector<2x1x128xf32>
    %205 = tpu.concatenate %197, %198, %199, %200, %201, %202, %203, %204 in 1 : vector<2x1x128xf32>, vector<2x1x128xf32>, vector<2x1x128xf32>, vector<2x1x128xf32>, vector<2x1x128xf32>, vector<2x1x128xf32>, vector<2x1x128xf32>, vector<2x1x128xf32> -> vector<2x8x128xf32>
    %206 = vector.shape_cast %205 : vector<2x8x128xf32> to vector<16x128xf32>
    %c0_65 = arith.constant 0 : index
    %c0_66 = arith.constant 0 : index
    %207 = vector.load %arg6[%c0_65, %c0_66] : memref<128x128xf32, #tpu.memory_space<vmem>>, vector<128x128xf32>
    %cst_67 = arith.constant dense<0.000000e+00> : vector<16x128xf32>
    %208 = tpu.matmul %206, %207, %cst_67 {dimension_numbers = #tpu.dot_dimension_numbers<[1], [0], [0], [1], [0, 0, 1, 1], [], []>} : vector<16x128xf32>, vector<128x128xf32>, vector<16x128xf32> -> vector<16x128xf32>
    %209 = vector.shape_cast %208 : vector<16x128xf32> to vector<2x8x128xf32>
    %c0_68 = arith.constant 0 : index
    %c0_69 = arith.constant 0 : index
    %c0_70 = arith.constant 0 : index
    %210 = vector.load %arg8[%c0_68, %c0_69, %c0_70] : memref<2x8x128xf32, #tpu.memory_space<vmem>>, vector<2x8x128xf32>
    tpu.vector_store %arg8[%c0_68, %c0_69, %c0_70], %209 {strides = array<i32>} : memref<2x8x128xf32, #tpu.memory_space<vmem>>, vector<2x8x128xf32>,
    return
  }
  func.func @transform_0(%arg0: i32, %arg1: i32) -> (i32, i32, i32) {
    %c0_i32 = arith.constant 0 : i32
    %c0_i32_0 = arith.constant 0 : i32
    return %arg0, %arg1, %c0_i32 : i32, i32, i32
  }
  func.func @transform_1(%arg0: i32, %arg1: i32) -> (i32, i32, i32) {
    %c0_i32 = arith.constant 0 : i32
    %c0_i32_0 = arith.constant 0 : i32
    %c0_i32_1 = arith.constant 0 : i32
    return %arg0, %c0_i32, %c0_i32_0 : i32, i32, i32
  }
  func.func @transform_2(%arg0: i32, %arg1: i32) -> (i32, i32) {
    %c0_i32 = arith.constant 0 : i32
    %c0_i32_0 = arith.constant 0 : i32
    %c0_i32_1 = arith.constant 0 : i32
    return %c0_i32, %c0_i32_0 : i32, i32
  }
  func.func @transform_3(%arg0: i32, %arg1: i32) -> (i32, i32) {
    %c0_i32 = arith.constant 0 : i32
    %c0_i32_0 = arith.constant 0 : i32
    %c0_i32_1 = arith.constant 0 : i32
    return %c0_i32, %c0_i32_0 : i32, i32
  }
  func.func @transform_4(%arg0: i32, %arg1: i32) -> (i32, i32) {
    %c0_i32 = arith.constant 0 : i32
    %c0_i32_0 = arith.constant 0 : i32
    %c0_i32_1 = arith.constant 0 : i32
    return %c0_i32, %c0_i32_0 : i32, i32
  }
  func.func @transform_5(%arg0: i32, %arg1: i32) -> (i32, i32) {
    %c0_i32 = arith.constant 0 : i32
    %c0_i32_0 = arith.constant 0 : i32
    %c0_i32_1 = arith.constant 0 : i32
    return %c0_i32, %c0_i32_0 : i32, i32
  }
  func.func @transform_6(%arg0: i32, %arg1: i32) -> (i32, i32, i32) {
    %c0_i32 = arith.constant 0 : i32
    %c0_i32_0 = arith.constant 0 : i32
    return %arg0, %arg1, %c0_i32 : i32, i32, i32
  }
  func.func @transform_7(%arg0: i32, %arg1: i32) -> (i32, i32, i32) {
    %c0_i32 = arith.constant 0 : i32
    %c0_i32_0 = arith.constant 0 : i32
    return %arg0, %arg1, %c0_i32 : i32, i32, i32
  }
}

</mosaic_0001>

<llo_original>
// kernel: tpu_custom_call.1
$region0: #{tpu_custom_call.1}
  #allocation0 [shape = 'u32[]', space=smem, size = 0x4, offset = 0x4, fixed_abs, tag = 'smem constant byte address 0x4 - core index']
  #allocation1 [shape = 'u32[144,128]{1,0:T(1,128)}', space=vmem, size = 0x12000, scoped, tag = 'internal scratch']
  #allocation2 [shape = 'f32[2,128]{1,0:T(2,128)}', space=vmem, size = 0x400, scoped, tag = 'scratch operand']
  %s0 = inlined_call_operand.hbm [shape: f32[2,16,128], index: 0, kind: input, shape index: {}]
  %s1 = inlined_call_operand.hbm [shape: f32[2,1,128], index: 1, kind: input, shape index: {}]
  %s2 = inlined_call_operand.hbm [shape: f32[128,128], index: 2, kind: input, shape index: {}]
  %s3 = inlined_call_operand.hbm [shape: f32[128,128], index: 3, kind: input, shape index: {}]
  %s4 = inlined_call_operand.hbm [shape: f32[128,128], index: 4, kind: input, shape index: {}]
  %s5 = inlined_call_operand.vmem [shape: f32[1,128], index: 5, kind: input, shape index: {}]
  %s6 = inlined_call_operand.hbm [shape: f32[2,16,128], index: 6, kind: output, shape index: {0}]
  %s7 = inlined_call_operand.hbm [shape: f32[2,16,128], index: 7, kind: output, shape index: {1}]
  %8 = xla_tuple %s6, %s7
  %s9 = sld [smem:[#allocation0]]
  $region89: #{tpu_custom_call.1} parent=0
    _
  %s11 = ssub.s32 1, %s9
  %s12 = scalar_select 0, %s11, %s9
  $region1: #{tpu_custom_call.1} parent=0
    #allocation3 [shape = 'u8[16384]{0}', space=vmem, size = 0x4000, scoped, tag = 'input window, operand 0']
    #allocation4 [shape = 's32[2]{0}', space=sflag, size = 0x8, scoped, tag = 'scoped memory for tpu_custom_call.1']
    #allocation5 [shape = 's32[2]{0}', space=sflag, size = 0x8, scoped, tag = 'scoped memory for tpu_custom_call.1']
    #allocation6 [shape = 'u8[1024]{0}', space=vmem, size = 0x400, scoped, tag = 'input window, operand 1, single buffered']
    #allocation7 [shape = 's32[1]{0}', space=sflag, size = 0x4, scoped, tag = 'scoped memory for tpu_custom_call.1']
    #allocation8 [shape = 'u8[65536]{0}', space=vmem, size = 0x10000, scoped, tag = 'input window, operand 2, single buffered']
    #allocation9 [shape = 'u8[65536]{0}', space=vmem, size = 0x10000, scoped, tag = 'input window, operand 3, single buffered']
    #allocation10 [shape = 's32[1]{0}', space=sflag, size = 0x4, scoped, tag = 'scoped memory for tpu_custom_call.1']
    #allocation11 [shape = 'u8[65536]{0}', space=vmem, size = 0x10000, scoped, tag = 'input window, operand 4, single buffered']
    #allocation12 [shape = 'u8[16384]{0}', space=vmem, size = 0x4000, scoped, tag = 'output window, operand 0']
    #allocation13 [shape = 'u8[16384]{0}', space=vmem, size = 0x4000, scoped, tag = 'output window, operand 1']
    #allocation14 [shape = 's32[2]{0}', space=sflag, size = 0x8, scoped, tag = 'scoped memory for tpu_custom_call.1']
    %13 = vsyncpa [#allocation4], 0
    %s14 = scalar_lea.sflag [#allocation4], 1
    %15 = vsyncpa %s14, 0
    %16 = vsyncpa [#allocation7], 0
    %17 = vsyncpa [#allocation10], 0
    %18 = vsyncpa [#allocation5], 0
    %s19 = scalar_lea.sflag [#allocation5], 1
    %20 = vsyncpa %s19, 0
    %21 = vsyncpa [#allocation14], 0
    %s22 = scalar_lea.sflag [#allocation14], 1
    %23 = vsyncpa %s22, 0
    loop: start=0, step=1, limit=4
    $region2: #{tpu_custom_call.1} parent=1 // loop_pre_header
      _
    $region3: #{tpu_custom_call.1} parent=1 // loop_header
      %s25 = sphi 0, %s29
      %p26 = scmp.ge.s32.totalorder %s25, 4
      %s32 = sphi 0, %s44
      %s33 = sphi 0, %s40
      %s34 = sphi 0, %s32
      %s35 = sphi 0, %s33
      %s36 = sphi 0, %s34
      %s37 = sphi 0, %s35
      %s49 = sphi 0, %s51
      %s52 = sphi 0, %s49
      %s53 = sphi 0, %s52
      %s69 = sphi 0, %s53
      %s75 = sphi 0, %s77
      %s78 = sphi 0, %s75
      %s79 = sphi 0, %s78
      %s95 = sphi 0, %s79
      %s99 = sphi 0, %s99
      %s101 = sphi 0, %s99
      %s102 = sphi 0, %s101
      %s116 = sphi 0, %s102
      %s120 = sphi 0, %s120
      %s122 = sphi 0, %s120
      %s123 = sphi 0, %s122
      %s137 = sphi 0, %s123
      %s141 = sphi 0, %s141
      %s143 = sphi 0, %s141
      %s144 = sphi 0, %s143
      %s158 = sphi 0, %s144
      %s162 = sphi 0, %s162
      %s164 = sphi 0, %s162
      %s165 = sphi 0, %s164
      %s179 = sphi 0, %s165
      %s187 = sphi 0, %s189
      %s190 = sphi 0, %s187
      %s191 = sphi 0, %s190
      %s207 = sphi 0, %s191
      %s215 = sphi 0, %s217
      %s218 = sphi 0, %s215
      %s219 = sphi 0, %s218
      %s235 = sphi 0, %s219
    $region4: #{tpu_custom_call.1} parent=1 // loop_header_branch
      %28 = sbr.rel (%p26) target = $region8
    $region5: #{tpu_custom_call.1} parent=1 // loop_body
      %s30 = ssub.s32 %s25, 1
      %s31 = ssub.s32 %s25, 2
      %s38 = sadd.s32 1, %s33
      %p39 = scmp.ge.s32.totalorder %s38, 2
      %s40 = scalar_select %p39, 0, %s38
      %s41 = sadd.s32 1, %s32
      %s42 = scalar_select %p39, %s41, %s32
      %p43 = scmp.ge.s32.totalorder %s42, 1
      %s44 = scalar_select %p43, 0, %s42
      %s45 = ssub.s32 %s32, %s44
      %s46 = ssub.s32 %s33, %s40
      %s47 = sor.u32 %s45, %s46
      %p48 = scmp.eq.s32.totalorder %s47, 0
      %s50 = sadd.s32 %s49, 1
      %s51 = scalar_select %p48, %s49, %s50
      %p54 = pneg %p48
      %p55 = scmp.eq.s32.totalorder %s25, 1
      %p56 = por %p54, %p55
      %p57 = scmp.ne.s32.totalorder %s49, %s52
      %p58 = scmp.eq.s32.totalorder %s25, 0
      %p59 = por %p57, %p58
      %p60 = scmp.ne.s32.totalorder %s49, %s52
      %p61 = scmp.eq.s32.totalorder %s30, 1
      %p62 = por %p60, %p61
      %p63 = scmp.ne.s32.totalorder %s52, %s53
      %p64 = scmp.eq.s32.totalorder %s30, 0
      %p65 = por %p63, %p64
      %p66 = scmp.ne.s32.totalorder %s52, %s53
      %p67 = scmp.eq.s32.totalorder %s31, 1
      %p68 = por %p66, %p67
      %p70 = scmp.ne.s32.totalorder %s53, %s69
      %p71 = scmp.eq.s32.totalorder %s31, 0
      %p72 = por %p70, %p71
      %s73 = ssub.s32 %s32, %s44
      %p74 = scmp.eq.s32.totalorder %s73, 0
      %s76 = sadd.s32 %s75, 1
      %s77 = scalar_select %p74, %s75, %s76
      %p80 = pneg %p74
      %p81 = scmp.eq.s32.totalorder %s25, 1
      %p82 = por %p80, %p81
      %p83 = scmp.ne.s32.totalorder %s75, %s78
      %p84 = scmp.eq.s32.totalorder %s25, 0
      %p85 = por %p83, %p84
      %p86 = scmp.ne.s32.totalorder %s75, %s78
      %p87 = scmp.eq.s32.totalorder %s30, 1
      %p88 = por %p86, %p87
      %p89 = scmp.ne.s32.totalorder %s78, %s79
      %p90 = scmp.eq.s32.totalorder %s30, 0
      %p91 = por %p89, %p90
      %p92 = scmp.ne.s32.totalorder %s78, %s79
      %p93 = scmp.eq.s32.totalorder %s31, 1
      %p94 = por %p92, %p93
      %p96 = scmp.ne.s32.totalorder %s79, %s95
      %p97 = scmp.eq.s32.totalorder %s31, 0
      %p98 = por %p96, %p97
      %s100 = sadd.s32 %s99, 1
      %p103 = scmp.eq.s32.totalorder %s25, 1
      %p104 = scmp.ne.s32.totalorder %s99, %s101
      %p105 = scmp.eq.s32.totalorder %s25, 0
      %p106 = por %p104, %p105
      %p107 = scmp.ne.s32.totalorder %s99, %s101
      %p108 = scmp.eq.s32.totalorder %s30, 1
      %p109 = por %p107, %p108
      %p110 = scmp.ne.s32.totalorder %s101, %s102
      %p111 = scmp.eq.s32.totalorder %s30, 0
      %p112 = por %p110, %p111
      %p113 = scmp.ne.s32.totalorder %s101, %s102
      %p114 = scmp.eq.s32.totalorder %s31, 1
      %p115 = por %p113, %p114
      %p117 = scmp.ne.s32.totalorder %s102, %s116
      %p118 = scmp.eq.s32.totalorder %s31, 0
      %p119 = por %p117, %p118
      %s121 = sadd.s32 %s120, 1
      %p124 = scmp.eq.s32.totalorder %s25, 1
      %p125 = scmp.ne.s32.totalorder %s120, %s122
      %p126 = scmp.eq.s32.totalorder %s25, 0
      %p127 = por %p125, %p126
      %p128 = scmp.ne.s32.totalorder %s120, %s122
      %p129 = scmp.eq.s32.totalorder %s30, 1
      %p130 = por %p128, %p129
      %p131 = scmp.ne.s32.totalorder %s122, %s123
      %p132 = scmp.eq.s32.totalorder %s30, 0
      %p133 = por %p131, %p132
      %p134 = scmp.ne.s32.totalorder %s122, %s123
      %p135 = scmp.eq.s32.totalorder %s31, 1
      %p136 = por %p134, %p135
      %p138 = scmp.ne.s32.totalorder %s123, %s137
      %p139 = scmp.eq.s32.totalorder %s31, 0
      %p140 = por %p138, %p139
      %s142 = sadd.s32 %s141, 1
      %p145 = scmp.eq.s32.totalorder %s25, 1
      %p146 = scmp.ne.s32.totalorder %s141, %s143
      %p147 = scmp.eq.s32.totalorder %s25, 0
      %p148 = por %p146, %p147
      %p149 = scmp.ne.s32.totalorder %s141, %s143
      %p150 = scmp.eq.s32.totalorder %s30, 1
      %p151 = por %p149, %p150
      %p152 = scmp.ne.s32.totalorder %s143, %s144
      %p153 = scmp.eq.s32.totalorder %s30, 0
      %p154 = por %p152, %p153
      %p155 = scmp.ne.s32.totalorder %s143, %s144
      %p156 = scmp.eq.s32.totalorder %s31, 1
      %p157 = por %p155, %p156
      %p159 = scmp.ne.s32.totalorder %s144, %s158
      %p160 = scmp.eq.s32.totalorder %s31, 0
      %p161 = por %p159, %p160
      %s163 = sadd.s32 %s162, 1
      %p166 = scmp.eq.s32.totalorder %s25, 1
      %p167 = scmp.ne.s32.totalorder %s162, %s164
      %p168 = scmp.eq.s32.totalorder %s25, 0
      %p169 = por %p167, %p168
      %p170 = scmp.ne.s32.totalorder %s162, %s164
      %p171 = scmp.eq.s32.totalorder %s30, 1
      %p172 = por %p170, %p171
      %p173 = scmp.ne.s32.totalorder %s164, %s165
      %p174 = scmp.eq.s32.totalorder %s30, 0
      %p175 = por %p173, %p174
      %p176 = scmp.ne.s32.totalorder %s164, %s165
      %p177 = scmp.eq.s32.totalorder %s31, 1
      %p178 = por %p176, %p177
      %p180 = scmp.ne.s32.totalorder %s165, %s179
      %p181 = scmp.eq.s32.totalorder %s31, 0
      %p182 = por %p180, %p181
      %s183 = ssub.s32 %s32, %s44
      %s184 = ssub.s32 %s33, %s40
      %s185 = sor.u32 %s183, %s184
      %p186 = scmp.eq.s32.totalorder %s185, 0
      %s188 = sadd.s32 %s187, 1
      %s189 = scalar_select %p186, %s187, %s188
      %p192 = pneg %p186
      %p193 = scmp.eq.s32.totalorder %s25, 1
      %p194 = por %p192, %p193
      %p195 = scmp.ne.s32.totalorder %s187, %s190
      %p196 = scmp.eq.s32.totalorder %s25, 0
      %p197 = por %p195, %p196
      %p198 = scmp.ne.s32.totalorder %s187, %s190
      %p199 = scmp.eq.s32.totalorder %s30, 1
      %p200 = por %p198, %p199
      %p201 = scmp.ne.s32.totalorder %s190, %s191
      %p202 = scmp.eq.s32.totalorder %s30, 0
      %p203 = por %p201, %p202
      %p204 = scmp.ne.s32.totalorder %s190, %s191
      %p205 = scmp.eq.s32.totalorder %s31, 1
      %p206 = por %p204, %p205
      %p208 = scmp.ne.s32.totalorder %s191, %s207
      %p209 = scmp.eq.s32.totalorder %s31, 0
      %p210 = por %p208, %p209
      %s211 = ssub.s32 %s32, %s44
      %s212 = ssub.s32 %s33, %s40
      %s213 = sor.u32 %s211, %s212
      %p214 = scmp.eq.s32.totalorder %s213, 0
      %s216 = sadd.s32 %s215, 1
      %s217 = scalar_select %p214, %s215, %s216
      %p220 = pneg %p214
      %p221 = scmp.eq.s32.totalorder %s25, 1
      %p222 = por %p220, %p221
      %p223 = scmp.ne.s32.totalorder %s215, %s218
      %p224 = scmp.eq.s32.totalorder %s25, 0
      %p225 = por %p223, %p224
      %p226 = scmp.ne.s32.totalorder %s215, %s218
      %p227 = scmp.eq.s32.totalorder %s30, 1
      %p228 = por %p226, %p227
      %p229 = scmp.ne.s32.totalorder %s218, %s219
      %p230 = scmp.eq.s32.totalorder %s30, 0
      %p231 = por %p229, %p230
      %p232 = scmp.ne.s32.totalorder %s218, %s219
      %p233 = scmp.eq.s32.totalorder %s31, 1
      %p234 = por %p232, %p233
      %p236 = scmp.ne.s32.totalorder %s219, %s235
      %p237 = scmp.eq.s32.totalorder %s31, 0
      %p238 = por %p236, %p237
      %p239 = scmp.le.s32.totalorder 1, %s25
      %p240 = scmp.lt.s32.totalorder %s25, 3
      %p241 = pnand %p239, %p240
      %p242 = pneg %p241
      // Predicated region
      $region9: #{tpu_custom_call.1} parent=5 // pred_check
        _
      $region10: #{tpu_custom_call.1} parent=5 // pred_check_branch
        %244 = sbr.rel (%p241) target = $region12
      $region11: #{tpu_custom_call.1} parent=5 // pred_region
        %s245 = ssub.s32 %s25, 1
        // Predicated region
        $region13: #{tpu_custom_call.1} parent=11 // pred_check
          %p246 = pneg %p91
        $region14: #{tpu_custom_call.1} parent=11 // pred_check_branch
          %248 = sbr.rel (%p246) target = $region16
        $region15: #{tpu_custom_call.1} parent=11 // pred_region
          %s249 = smul.u32 2, %s34
          %s251 = ssub.s32 32, 32
          %252 = vsyncadd [#allocation7], %s251
          %s253 = smul.addr %s249, 16
          %s254 = scalar_lea.hbm %s1, %s253
          %s255 = sshll.u32 [#allocation6], 4
          %s256 = int_to_ptr.vmem [resolvable:$true] %s255
          %261 = dma.hbm_to_vmem [thread:$0]  %s254, 32, %s256, [#allocation7], 16, 16, 1
        $region16: #{tpu_custom_call.1} parent=11 // pred_fallthru
          _
        // Predicated region
        $region17: #{tpu_custom_call.1} parent=11 // pred_check
          %p262 = pneg %p112
        $region18: #{tpu_custom_call.1} parent=11 // pred_check_branch
          %264 = sbr.rel (%p262) target = $region20
        $region19: #{tpu_custom_call.1} parent=11 // pred_region
          %s266 = ssub.s32 2048, 2048
          %267 = vsyncadd [#allocation7], %s266
          %s268 = sshll.u32 [#allocation8], 4
          %s269 = int_to_ptr.vmem [resolvable:$true] %s268
          %274 = dma.hbm_to_vmem [thread:$0]  %s2, 2048, %s269, [#allocation7], 128, 128, 8
        $region20: #{tpu_custom_call.1} parent=11 // pred_fallthru
          _
        // Predicated region
        $region21: #{tpu_custom_call.1} parent=11 // pred_check
          %p275 = pneg %p133
        $region22: #{tpu_custom_call.1} parent=11 // pred_check_branch
          %277 = sbr.rel (%p275) target = $region24
        $region23: #{tpu_custom_call.1} parent=11 // pred_region
          %s279 = ssub.s32 2048, 2048
          %280 = vsyncadd [#allocation10], %s279
          %s281 = sshll.u32 [#allocation9], 4
          %s282 = int_to_ptr.vmem [resolvable:$true] %s281
          %287 = dma.hbm_to_vmem [thread:$0]  %s3, 2048, %s282, [#allocation10], 128, 128, 8
        $region24: #{tpu_custom_call.1} parent=11 // pred_fallthru
          _
        // Predicated region
        $region25: #{tpu_custom_call.1} parent=11 // pred_check
          %p288 = pneg %p154
        $region26: #{tpu_custom_call.1} parent=11 // pred_check_branch
          %290 = sbr.rel (%p288) target = $region28
        $region27: #{tpu_custom_call.1} parent=11 // pred_region
          %s292 = ssub.s32 2048, 2048
          %293 = vsyncadd [#allocation10], %s292
          %s294 = sshll.u32 [#allocation11], 4
          %s295 = int_to_ptr.vmem [resolvable:$true] %s294
          %300 = dma.hbm_to_vmem [thread:$0]  %s4, 2048, %s295, [#allocation10], 128, 128, 8
        $region28: #{tpu_custom_call.1} parent=11 // pred_fallthru
          _
        // Predicated region
        $region29: #{tpu_custom_call.1} parent=11 // pred_check
          %p301 = pneg %p175
        $region30: #{tpu_custom_call.1} parent=11 // pred_check_branch
          %303 = sbr.rel (%p301) target = $region32
        $region31: #{tpu_custom_call.1} parent=11 // pred_region
          _
        $region32: #{tpu_custom_call.1} parent=11 // pred_fallthru
          _
      $region12: #{tpu_custom_call.1} parent=5 // pred_fallthru
        _
      %p304 = scmp.lt.s32.totalorder %s25, 2
      // Predicated region
      $region33: #{tpu_custom_call.1} parent=5 // pred_check
        %p305 = pneg %p304
      $region34: #{tpu_custom_call.1} parent=5 // pred_check_branch
        %307 = sbr.rel (%p305) target = $region36
      $region35: #{tpu_custom_call.1} parent=5 // pred_region
        // Predicated region
        $region37: #{tpu_custom_call.1} parent=35 // pred_check
          %p308 = pneg %p59
        $region38: #{tpu_custom_call.1} parent=35 // pred_check_branch
          %310 = sbr.rel (%p308) target = $region40
        $region39: #{tpu_custom_call.1} parent=35 // pred_region
          %s311 = sand.u32 %s49, 1
          %s312 = scalar_lea.sflag [#allocation4], %s311
          %s313 = sand.u32 %s49, 1
          %s314 = smul.addr %s313, 16
          %s315 = scalar_lea.vmem [#allocation3], %s314
          %s316 = smul.u32 2, %s32
          %s318 = ssub.s32 256, 256
          %319 = vsyncadd %s312, %s318
          %s320 = smul.addr %s316, 2
          %s321 = sadd.s32 %s33, %s320
          %s322 = smul.addr %s321, 128
          %s323 = scalar_lea.hbm %s0, %s322
          %s324 = sshll.u32 %s315, 4
          %s325 = int_to_ptr.vmem [resolvable:$true] %s324
          %330 = dma.hbm_to_vmem [thread:$0]  %s323, 256, %s325, %s312, 256, 128, 8
        $region40: #{tpu_custom_call.1} parent=35 // pred_fallthru
          _
      $region36: #{tpu_custom_call.1} parent=5 // pred_fallthru
        _
      %p331 = scmp.le.s32.totalorder 1, %s25
      %p332 = scmp.lt.s32.totalorder %s25, 3
      %p333 = pnand %p331, %p332
      %p334 = pneg %p333
      // Predicated region
      $region41: #{tpu_custom_call.1} parent=5 // pred_check
        _
      $region42: #{tpu_custom_call.1} parent=5 // pred_check_branch
        %336 = sbr.rel (%p333) target = $region44
      $region43: #{tpu_custom_call.1} parent=5 // pred_region
        %s337 = ssub.s32 %s25, 1
        %s338 = sand.u32 %s52, 1
        %s339 = scalar_lea.sflag [#allocation4], %s338
        %s340 = sand.u32 %s52, 1
        %s341 = smul.addr %s340, 16
        %s342 = scalar_lea.vmem [#allocation3], %s341
        // Predicated region
        $region45: #{tpu_custom_call.1} parent=43 // pred_check
          %p343 = pneg %p65
        $region46: #{tpu_custom_call.1} parent=43 // pred_check_branch
          %345 = sbr.rel (%p343) target = $region48
        $region47: #{tpu_custom_call.1} parent=43 // pred_region
          %346 = dma.done %s339, 256
        $region48: #{tpu_custom_call.1} parent=43 // pred_fallthru
          _
        // Predicated region
        $region49: #{tpu_custom_call.1} parent=43 // pred_check
          %p347 = pneg %p91
        $region50: #{tpu_custom_call.1} parent=43 // pred_check_branch
          %349 = sbr.rel (%p347) target = $region52
        $region51: #{tpu_custom_call.1} parent=43 // pred_region
          %350 = dma.done [#allocation7], 32
        $region52: #{tpu_custom_call.1} parent=43 // pred_fallthru
          _
        // Predicated region
        $region53: #{tpu_custom_call.1} parent=43 // pred_check
          %p351 = pneg %p112
        $region54: #{tpu_custom_call.1} parent=43 // pred_check_branch
          %353 = sbr.rel (%p351) target = $region56
        $region55: #{tpu_custom_call.1} parent=43 // pred_region
          %354 = dma.done [#allocation7], 2048
        $region56: #{tpu_custom_call.1} parent=43 // pred_fallthru
          _
        // Predicated region
        $region57: #{tpu_custom_call.1} parent=43 // pred_check
          %p355 = pneg %p133
        $region58: #{tpu_custom_call.1} parent=43 // pred_check_branch
          %357 = sbr.rel (%p355) target = $region60
        $region59: #{tpu_custom_call.1} parent=43 // pred_region
          %358 = dma.done [#allocation10], 2048
        $region60: #{tpu_custom_call.1} parent=43 // pred_fallthru
          _
        // Predicated region
        $region61: #{tpu_custom_call.1} parent=43 // pred_check
          %p359 = pneg %p154
        $region62: #{tpu_custom_call.1} parent=43 // pred_check_branch
          %361 = sbr.rel (%p359) target = $region64
        $region63: #{tpu_custom_call.1} parent=43 // pred_region
          %362 = dma.done [#allocation10], 2048
        $region64: #{tpu_custom_call.1} parent=43 // pred_fallthru
          _
        %s363 = sand.u32 %s52, 1
        %s364 = scalar_lea.sflag [#allocation4], %s363
        %s365 = sand.u32 %s52, 1
        %s366 = smul.addr %s365, 16
        %s367 = scalar_lea.vmem [#allocation3], %s366
        %p368 = pneg %p65
        %p369 = pneg %p62
        %p370 = pneg %p91
        %p371 = pneg %p88
        %p372 = pneg %p112
        %p373 = pneg %p109
        %p374 = pneg %p133
        %p375 = pneg %p130
        %p376 = pneg %p154
        %p377 = pneg %p151
        %p378 = pneg %p175
        %p379 = pneg %p172
        %p380 = pneg %p203
        %p381 = pneg %p200
        %s382 = sand.u32 %s190, 1
        %s383 = scalar_lea.sflag [#allocation5], %s382
        %s384 = sand.u32 %s190, 1
        %s385 = smul.addr %s384, 16
        %s386 = scalar_lea.vmem [#allocation12], %s385
        %p387 = pneg %p231
        %p388 = pneg %p228
        %s389 = sand.u32 %s218, 1
        %s390 = scalar_lea.sflag [#allocation14], %s389
        %s391 = sand.u32 %s218, 1
        %s392 = smul.addr %s391, 16
        %s393 = scalar_lea.vmem [#allocation13], %s392
        %s394 = smul.u32 2, %s34
        %s395 = smul.u32 2, %s34
        %s396 = smul.u32 2, %s34
        %s397 = smul.u32 2, %s34
        %p398 = scmp.eq.s32.totalorder %s35, 0
        // Predicated region
        $region65: #{tpu_custom_call.1} parent=43 // pred_check
          %p399 = pneg %p398
        $region66: #{tpu_custom_call.1} parent=43 // pred_check_branch
          %401 = sbr.rel (%p399) target = $region68
        $region67: #{tpu_custom_call.1} parent=43 // pred_region
          %v402 = vld [vmem:[#allocation6] sm:$0x1]
          %v403 = vld [vmem:[#allocation6 + $0x1] sm:$0x1]
          %v406 = vcombine.low %v402, %v403
          %v408 = vunpack.c.l.s4 1966171168
          %v409 = vunpack.c.0.s8 %v408
          %v410 = vlaneseq
          %v411 = vshrl.u32 %v410, 7
          %v412 = vsub.s32 %v409, %v411
          %v413 = vrot.slane %v406, %v412
          %v415 = vunpack.c.l.s4 1966171168
          %v416 = vunpack.c.0.s8 %v415
          %v417 = vlaneseq
          %v418 = vshrl.u32 %v417, 7
          %v419 = vsub.s32 %v416, %v418
          %v420 = vrot.slane %v413, %v419
          %422 = vst [vmem:[#allocation2] sm:$0x3] %v420
        $region68: #{tpu_custom_call.1} parent=43 // pred_fallthru
          _
        %v423 = vld [vmem:[%s5] sm:$0x1]
        %v424 = vld [vmem:[%s342] sm:$0xff]
        %v425 = vld [vmem:[%s342 + $0x8] sm:$0xff]
        %v426 = vld [vmem:[#allocation8] sm:$0xff]
        %v427 = vld [vmem:[#allocation8 + $0x8] sm:$0xff]
        %v428 = vld [vmem:[#allocation8 + $0x10] sm:$0xff]
        %v429 = vld [vmem:[#allocation8 + $0x18] sm:$0xff]
        %v430 = vld [vmem:[#allocation8 + $0x20] sm:$0xff]
        %v431 = vld [vmem:[#allocation8 + $0x28] sm:$0xff]
        %v432 = vld [vmem:[#allocation8 + $0x30] sm:$0xff]
        %v433 = vld [vmem:[#allocation8 + $0x38] sm:$0xff]
        %v434 = vld [vmem:[#allocation8 + $0x40] sm:$0xff]
        %v435 = vld [vmem:[#allocation8 + $0x48] sm:$0xff]
        %v436 = vld [vmem:[#allocation8 + $0x50] sm:$0xff]
        %v437 = vld [vmem:[#allocation8 + $0x58] sm:$0xff]
        %v438 = vld [vmem:[#allocation8 + $0x60] sm:$0xff]
        %v439 = vld [vmem:[#allocation8 + $0x68] sm:$0xff]
        %v440 = vld [vmem:[#allocation8 + $0x70] sm:$0xff]
        %v441 = vld [vmem:[#allocation8 + $0x78] sm:$0xff]
        %v443 = vlaneseq
        %v444 = vshrl.u32 %v443, 7
        %v445 = vsub.s32 0, %v444
        %v446 = vrot.slane %v423, %v445
        %448 = vmatprep.subr.mxu0 0.0
        %449 = vmatpush1.msra.mxu0 %v441
        %450 = vmatprep.subr.mxu0 0.0
        %451 = vmatpush1.msra.mxu0 %v440
        %452 = vmatprep.subr.mxu0 0.0
        %453 = vmatpush1.msra.mxu0 %v439
        %454 = vmatprep.subr.mxu0 0.0
        %455 = vmatpush1.msra.mxu0 %v438
        %456 = vmatprep.subr.mxu0 0.0
        %457 = vmatpush1.msra.mxu0 %v437
        %458 = vmatprep.subr.mxu0 0.0
        %459 = vmatpush1.msra.mxu0 %v436
        %460 = vmatprep.subr.mxu0 0.0
        %461 = vmatpush1.msra.mxu0 %v435
        %462 = vmatprep.subr.mxu0 0.0
        %463 = vmatpush1.msra.mxu0 %v434
        %464 = vmatprep.subr.mxu0 0.0
        %465 = vmatpush1.msra.mxu0 %v433
        %466 = vmatprep.subr.mxu0 0.0
        %467 = vmatpush1.msra.mxu0 %v432
        %468 = vmatprep.subr.mxu0 0.0
        %469 = vmatpush1.msra.mxu0 %v431
        %470 = vmatprep.subr.mxu0 0.0
        %471 = vmatpush1.msra.mxu0 %v430
        %472 = vmatprep.subr.mxu0 0.0
        %473 = vmatpush1.msra.mxu0 %v429
        %474 = vmatprep.subr.mxu0 0.0
        %475 = vmatpush1.msra.mxu0 %v428
        %476 = vmatprep.subr.mxu0 0.0
        %477 = vmatpush1.msra.mxu0 %v427
        %478 = vmatprep.subr.mxu0 0.0
        %479 = vmatpush1.msra.mxu0 %v426
        %480 = vmatprep.subr.mxu0 0.0
        %481 = vmatpush2.msra.mxu0 0.0
        %482 = vmatprep.subr.mxu0 0.0
        %483 = vmatpush2.msra.mxu0 0.0
        %484 = vmatprep.subr.mxu0 0.0
        %485 = vmatpush2.msra.mxu0 0.0
        %486 = vmatprep.subr.mxu0 0.0
        %487 = vmatpush2.msra.mxu0 0.0
        %488 = vmatprep.subr.mxu0 0.0
        %489 = vmatpush2.msra.mxu0 0.0
        %490 = vmatprep.subr.mxu0 0.0
        %491 = vmatpush2.msra.mxu0 0.0
        %492 = vmatprep.subr.mxu0 0.0
        %493 = vmatpush2.msra.mxu0 0.0
        %494 = vmatprep.subr.mxu0 0.0
        %495 = vmatpush2.msra.mxu0 0.0
        %496 = vmatprep.subr.mxu0 0.0
        %497 = vmatpush2.msra.mxu0 0.0
        %498 = vmatprep.subr.mxu0 0.0
        %499 = vmatpush2.msra.mxu0 0.0
        %500 = vmatprep.subr.mxu0 0.0
        %501 = vmatpush2.msra.mxu0 0.0
        %502 = vmatprep.subr.mxu0 0.0
        %503 = vmatpush2.msra.mxu0 0.0
        %504 = vmatprep.subr.mxu0 0.0
        %505 = vmatpush2.msra.mxu0 0.0
        %506 = vmatprep.subr.mxu0 0.0
        %507 = vmatpush2.msra.mxu0 0.0
        %508 = vmatprep.subr.mxu0 0.0
        %509 = vmatpush2.msra.mxu0 0.0
        %510 = vmatprep.subr.mxu0 0.0
        %511 = vmatpush2.msra.mxu0 0.0
        %512 = vmatprep.mubr.f32.mxu0 0.0
        %513 = vmatmul.mubr.f32.gmra.mxu0 %v424
        %v514 = vpop.f32.mrf.mxu0
        %v515 = vadd.f32 %v446, %v514
        %v516 = vpop.f32.mrf.mxu0
        %517 = vmatprep.mubr.f32.mxu0 0.0
        %518 = vmatmul.mubr.f32.gmra.mxu0 %v425
        %v519 = vpop.f32.mrf.mxu0
        %v520 = vadd.f32 %v446, %v519
        %v521 = vpop.f32.mrf.mxu0
        %522 = vdwg.mxu0
        %v523 = vld [vmem:[#allocation9] sm:$0xff]
        %v524 = vld [vmem:[#allocation9 + $0x8] sm:$0xff]
        %v525 = vld [vmem:[#allocation9 + $0x10] sm:$0xff]
        %v526 = vld [vmem:[#allocation9 + $0x18] sm:$0xff]
        %v527 = vld [vmem:[#allocation9 + $0x20] sm:$0xff]
        %v528 = vld [vmem:[#allocation9 + $0x28] sm:$0xff]
        %v529 = vld [vmem:[#allocation9 + $0x30] sm:$0xff]
        %v530 = vld [vmem:[#allocation9 + $0x38] sm:$0xff]
        %v531 = vld [vmem:[#allocation9 + $0x40] sm:$0xff]
        %v532 = vld [vmem:[#allocation9 + $0x48] sm:$0xff]
        %v533 = vld [vmem:[#allocation9 + $0x50] sm:$0xff]
        %v534 = vld [vmem:[#allocation9 + $0x58] sm:$0xff]
        %v535 = vld [vmem:[#allocation9 + $0x60] sm:$0xff]
        %v536 = vld [vmem:[#allocation9 + $0x68] sm:$0xff]
        %v537 = vld [vmem:[#allocation9 + $0x70] sm:$0xff]
        %v538 = vld [vmem:[#allocation9 + $0x78] sm:$0xff]
        %v539 = vld [vmem:[#allocation2] sm:$0x3]
        %v540 = vxor.u32 %v539, 2147483648
        %v541 = vmul.f32 %v540, 1.442695
        %v542 = vpow.pop %v541
        %v543 = vadd.f32 %v542, 1.0
        %v544 = vrcp.pop %v543
        %v545 = vmul.f32 1.0, %v544
        %546 = vmatprep.subr.mxu0 0.0
        %547 = vmatpush1.msra.mxu0 %v538
        %548 = vmatprep.subr.mxu0 0.0
        %549 = vmatpush1.msra.mxu0 %v537
        %550 = vmatprep.subr.mxu0 0.0
        %551 = vmatpush1.msra.mxu0 %v536
        %552 = vmatprep.subr.mxu0 0.0
        %553 = vmatpush1.msra.mxu0 %v535
        %554 = vmatprep.subr.mxu0 0.0
        %555 = vmatpush1.msra.mxu0 %v534
        %556 = vmatprep.subr.mxu0 0.0
        %557 = vmatpush1.msra.mxu0 %v533
        %558 = vmatprep.subr.mxu0 0.0
        %559 = vmatpush1.msra.mxu0 %v532
        %560 = vmatprep.subr.mxu0 0.0
        %561 = vmatpush1.msra.mxu0 %v531
        %562 = vmatprep.subr.mxu0 0.0
        %563 = vmatpush1.msra.mxu0 %v530
        %564 = vmatprep.subr.mxu0 0.0
        %565 = vmatpush1.msra.mxu0 %v529
        %566 = vmatprep.subr.mxu0 0.0
        %567 = vmatpush1.msra.mxu0 %v528
        %568 = vmatprep.subr.mxu0 0.0
        %569 = vmatpush1.msra.mxu0 %v527
        %570 = vmatprep.subr.mxu0 0.0
        %571 = vmatpush1.msra.mxu0 %v526
        %572 = vmatprep.subr.mxu0 0.0
        %573 = vmatpush1.msra.mxu0 %v525
        %574 = vmatprep.subr.mxu0 0.0
        %575 = vmatpush1.msra.mxu0 %v524
        %576 = vmatprep.subr.mxu0 0.0
        %577 = vmatpush1.msra.mxu0 %v523
        %578 = vmatprep.subr.mxu0 0.0
        %579 = vmatpush2.msra.mxu0 0.0
        %580 = vmatprep.subr.mxu0 0.0
        %581 = vmatpush2.msra.mxu0 0.0
        %582 = vmatprep.subr.mxu0 0.0
        %583 = vmatpush2.msra.mxu0 0.0
        %584 = vmatprep.subr.mxu0 0.0
        %585 = vmatpush2.msra.mxu0 0.0
        %586 = vmatprep.subr.mxu0 0.0
        %587 = vmatpush2.msra.mxu0 0.0
        %588 = vmatprep.subr.mxu0 0.0
        %589 = vmatpush2.msra.mxu0 0.0
        %590 = vmatprep.subr.mxu0 0.0
        %591 = vmatpush2.msra.mxu0 0.0
        %592 = vmatprep.subr.mxu0 0.0
        %593 = vmatpush2.msra.mxu0 0.0
        %594 = vmatprep.subr.mxu0 0.0
        %595 = vmatpush2.msra.mxu0 0.0
        %596 = vmatprep.subr.mxu0 0.0
        %597 = vmatpush2.msra.mxu0 0.0
        %598 = vmatprep.subr.mxu0 0.0
        %599 = vmatpush2.msra.mxu0 0.0
        %600 = vmatprep.subr.mxu0 0.0
        %601 = vmatpush2.msra.mxu0 0.0
        %602 = vmatprep.subr.mxu0 0.0
        %603 = vmatpush2.msra.mxu0 0.0
        %604 = vmatprep.subr.mxu0 0.0
        %605 = vmatpush2.msra.mxu0 0.0
        %606 = vmatprep.subr.mxu0 0.0
        %607 = vmatpush2.msra.mxu0 0.0
        %608 = vmatprep.subr.mxu0 0.0
        %609 = vmatpush2.msra.mxu0 0.0
        %610 = vmatprep.mubr.f32.mxu0 0.0
        %611 = vmatmul.mubr.f32.gmra.mxu0 %v545
        %v612 = vpop.f32.mrf.mxu0
        %v613 = vadd.f32 0.0, %v612
        %v614 = vpop.f32.mrf.mxu0
        %615 = vdwg.mxu0
        %v616 = vmul.f32 %v539, 0.9
        %v619 = vrot.slane %v520, 7
        %vm620 = vcmask 1041409
        %v621 = vsel %vm620, %v619, %v515
        %v623 = vadd.f32 %v616, %v621
        %v624 = vadd.f32 %v623, %v613
        %v625 = vmul.f32 %v539, %v539
        %v626 = vmul.f32 %v625, %v539
        %v627 = vmul.f32 %v626, 0.0001
        %v628 = vsub.f32 %v624, %v627
        %v629 = vmax.f32 %v628, -100.0
        %v630 = vmin.f32 %v629, 100.0
        %v631 = vxor.u32 %v630, 2147483648
        %v632 = vmul.f32 %v631, 1.442695
        %v633 = vpow.pop %v632
        %v634 = vadd.f32 %v633, 1.0
        %v635 = vrcp.pop %v634
        %v636 = vmul.f32 1.0, %v635
        %637 = vmatprep.subr.mxu0 0.0
        %638 = vmatpush1.msra.mxu0 %v538
        %639 = vmatprep.subr.mxu0 0.0
        %640 = vmatpush1.msra.mxu0 %v537
        %641 = vmatprep.subr.mxu0 0.0
        %642 = vmatpush1.msra.mxu0 %v536
        %643 = vmatprep.subr.mxu0 0.0
        %644 = vmatpush1.msra.mxu0 %v535
        %645 = vmatprep.subr.mxu0 0.0
        %646 = vmatpush1.msra.mxu0 %v534
        %647 = vmatprep.subr.mxu0 0.0
        %648 = vmatpush1.msra.mxu0 %v533
        %649 = vmatprep.subr.mxu0 0.0
        %650 = vmatpush1.msra.mxu0 %v532
        %651 = vmatprep.subr.mxu0 0.0
        %652 = vmatpush1.msra.mxu0 %v531
        %653 = vmatprep.subr.mxu0 0.0
        %654 = vmatpush1.msra.mxu0 %v530
        %655 = vmatprep.subr.mxu0 0.0
        %656 = vmatpush1.msra.mxu0 %v529
        %657 = vmatprep.subr.mxu0 0.0
        %658 = vmatpush1.msra.mxu0 %v528
        %659 = vmatprep.subr.mxu0 0.0
        %660 = vmatpush1.msra.mxu0 %v527
        %661 = vmatprep.subr.mxu0 0.0
        %662 = vmatpush1.msra.mxu0 %v526
        %663 = vmatprep.subr.mxu0 0.0
        %664 = vmatpush1.msra.mxu0 %v525
        %665 = vmatprep.subr.mxu0 0.0
        %666 = vmatpush1.msra.mxu0 %v524
        %667 = vmatprep.subr.mxu0 0.0
        %668 = vmatpush1.msra.mxu0 %v523
        %669 = vmatprep.subr.mxu0 0.0
        %670 = vmatpush2.msra.mxu0 0.0
        %671 = vmatprep.subr.mxu0 0.0
        %672 = vmatpush2.msra.mxu0 0.0
        %673 = vmatprep.subr.mxu0 0.0
        %674 = vmatpush2.msra.mxu0 0.0
        %675 = vmatprep.subr.mxu0 0.0
        %676 = vmatpush2.msra.mxu0 0.0
        %677 = vmatprep.subr.mxu0 0.0
        %678 = vmatpush2.msra.mxu0 0.0
        %679 = vmatprep.subr.mxu0 0.0
        %680 = vmatpush2.msra.mxu0 0.0
        %681 = vmatprep.subr.mxu0 0.0
        %682 = vmatpush2.msra.mxu0 0.0
        %683 = vmatprep.subr.mxu0 0.0
        %684 = vmatpush2.msra.mxu0 0.0
        %685 = vmatprep.subr.mxu0 0.0
        %686 = vmatpush2.msra.mxu0 0.0
        %687 = vmatprep.subr.mxu0 0.0
        %688 = vmatpush2.msra.mxu0 0.0
        %689 = vmatprep.subr.mxu0 0.0
        %690 = vmatpush2.msra.mxu0 0.0
        %691 = vmatprep.subr.mxu0 0.0
        %692 = vmatpush2.msra.mxu0 0.0
        %693 = vmatprep.subr.mxu0 0.0
        %694 = vmatpush2.msra.mxu0 0.0
        %695 = vmatprep.subr.mxu0 0.0
        %696 = vmatpush2.msra.mxu0 0.0
        %697 = vmatprep.subr.mxu0 0.0
        %698 = vmatpush2.msra.mxu0 0.0
        %699 = vmatprep.subr.mxu0 0.0
        %700 = vmatpush2.msra.mxu0 0.0
        %701 = vmatprep.mubr.f32.mxu0 0.0
        %702 = vmatmul.mubr.f32.gmra.mxu0 %v636
        %v703 = vpop.f32.mrf.mxu0
        %v704 = vadd.f32 0.0, %v703
        %v705 = vpop.f32.mrf.mxu0
        %706 = vdwg.mxu0
        %v707 = vmul.f32 %v630, 0.9
        %v708 = vrot.slane %v515, 1
        %v709 = vsel %vm620, %v520, %v708
        %v711 = vadd.f32 %v707, %v709
        %v712 = vadd.f32 %v711, %v704
        %v713 = vmul.f32 %v630, %v630
        %v714 = vmul.f32 %v713, %v630
        %v715 = vmul.f32 %v714, 0.0001
        %v716 = vsub.f32 %v712, %v715
        %v717 = vmax.f32 %v716, -100.0
        %v718 = vmin.f32 %v717, 100.0
        %v719 = vxor.u32 %v718, 2147483648
        %v720 = vmul.f32 %v719, 1.442695
        %v721 = vpow.pop %v720
        %v722 = vadd.f32 %v721, 1.0
        %v723 = vrcp.pop %v722
        %v724 = vmul.f32 1.0, %v723
        %725 = vmatprep.subr.mxu0 0.0
        %726 = vmatpush1.msra.mxu0 %v538
        %727 = vmatprep.subr.mxu0 0.0
        %728 = vmatpush1.msra.mxu0 %v537
        %729 = vmatprep.subr.mxu0 0.0
        %730 = vmatpush1.msra.mxu0 %v536
        %731 = vmatprep.subr.mxu0 0.0
        %732 = vmatpush1.msra.mxu0 %v535
        %733 = vmatprep.subr.mxu0 0.0
        %734 = vmatpush1.msra.mxu0 %v534
        %735 = vmatprep.subr.mxu0 0.0
        %736 = vmatpush1.msra.mxu0 %v533
        %737 = vmatprep.subr.mxu0 0.0
        %738 = vmatpush1.msra.mxu0 %v532
        %739 = vmatprep.subr.mxu0 0.0
        %740 = vmatpush1.msra.mxu0 %v531
        %741 = vmatprep.subr.mxu0 0.0
        %742 = vmatpush1.msra.mxu0 %v530
        %743 = vmatprep.subr.mxu0 0.0
        %744 = vmatpush1.msra.mxu0 %v529
        %745 = vmatprep.subr.mxu0 0.0
        %746 = vmatpush1.msra.mxu0 %v528
        %747 = vmatprep.subr.mxu0 0.0
        %748 = vmatpush1.msra.mxu0 %v527
        %749 = vmatprep.subr.mxu0 0.0
        %750 = vmatpush1.msra.mxu0 %v526
        %751 = vmatprep.subr.mxu0 0.0
        %752 = vmatpush1.msra.mxu0 %v525
        %753 = vmatprep.subr.mxu0 0.0
        %754 = vmatpush1.msra.mxu0 %v524
        %755 = vmatprep.subr.mxu0 0.0
        %756 = vmatpush1.msra.mxu0 %v523
        %757 = vmatprep.subr.mxu0 0.0
        %758 = vmatpush2.msra.mxu0 0.0
        %759 = vmatprep.subr.mxu0 0.0
        %760 = vmatpush2.msra.mxu0 0.0
        %761 = vmatprep.subr.mxu0 0.0
        %762 = vmatpush2.msra.mxu0 0.0
        %763 = vmatprep.subr.mxu0 0.0
        %764 = vmatpush2.msra.mxu0 0.0
        %765 = vmatprep.subr.mxu0 0.0
        %766 = vmatpush2.msra.mxu0 0.0
        %767 = vmatprep.subr.mxu0 0.0
        %768 = vmatpush2.msra.mxu0 0.0
        %769 = vmatprep.subr.mxu0 0.0
        %770 = vmatpush2.msra.mxu0 0.0
        %771 = vmatprep.subr.mxu0 0.0
        %772 = vmatpush2.msra.mxu0 0.0
        %773 = vmatprep.subr.mxu0 0.0
        %774 = vmatpush2.msra.mxu0 0.0
        %775 = vmatprep.subr.mxu0 0.0
        %776 = vmatpush2.msra.mxu0 0.0
        %777 = vmatprep.subr.mxu0 0.0
        %778 = vmatpush2.msra.mxu0 0.0
        %779 = vmatprep.subr.mxu0 0.0
        %780 = vmatpush2.msra.mxu0 0.0
        %781 = vmatprep.subr.mxu0 0.0
        %782 = vmatpush2.msra.mxu0 0.0
        %783 = vmatprep.subr.mxu0 0.0
        %784 = vmatpush2.msra.mxu0 0.0
        %785 = vmatprep.subr.mxu0 0.0
        %786 = vmatpush2.msra.mxu0 0.0
        %787 = vmatprep.subr.mxu0 0.0
        %788 = vmatpush2.msra.mxu0 0.0
        %789 = vmatprep.mubr.f32.mxu0 0.0
        %790 = vmatmul.mubr.f32.gmra.mxu0 %v724
        %v791 = vpop.f32.mrf.mxu0
        %v792 = vadd.f32 0.0, %v791
        %v793 = vpop.f32.mrf.mxu0
        %794 = vdwg.mxu0
        %v795 = vmul.f32 %v718, 0.9
        %v796 = vrot.slane %v515, 2
        %v797 = vrot.slane %v520, 1
        %v798 = vsel %vm620, %v797, %v796
        %v800 = vadd.f32 %v795, %v798
        %v801 = vadd.f32 %v800, %v792
        %v802 = vmul.f32 %v718, %v718
        %v803 = vmul.f32 %v802, %v718
        %v804 = vmul.f32 %v803, 0.0001
        %v805 = vsub.f32 %v801, %v804
        %v806 = vmax.f32 %v805, -100.0
        %v807 = vmin.f32 %v806, 100.0
        %v808 = vxor.u32 %v807, 2147483648
        %v809 = vmul.f32 %v808, 1.442695
        %v810 = vpow.pop %v809
        %v811 = vadd.f32 %v810, 1.0
        %v812 = vrcp.pop %v811
        %v813 = vmul.f32 1.0, %v812
        %814 = vmatprep.subr.mxu0 0.0
        %815 = vmatpush1.msra.mxu0 %v538
        %816 = vmatprep.subr.mxu0 0.0
        %817 = vmatpush1.msra.mxu0 %v537
        %818 = vmatprep.subr.mxu0 0.0
        %819 = vmatpush1.msra.mxu0 %v536
        %820 = vmatprep.subr.mxu0 0.0
        %821 = vmatpush1.msra.mxu0 %v535
        %822 = vmatprep.subr.mxu0 0.0
        %823 = vmatpush1.msra.mxu0 %v534
        %824 = vmatprep.subr.mxu0 0.0
        %825 = vmatpush1.msra.mxu0 %v533
        %826 = vmatprep.subr.mxu0 0.0
        %827 = vmatpush1.msra.mxu0 %v532
        %828 = vmatprep.subr.mxu0 0.0
        %829 = vmatpush1.msra.mxu0 %v531
        %830 = vmatprep.subr.mxu0 0.0
        %831 = vmatpush1.msra.mxu0 %v530
        %832 = vmatprep.subr.mxu0 0.0
        %833 = vmatpush1.msra.mxu0 %v529
        %834 = vmatprep.subr.mxu0 0.0
        %835 = vmatpush1.msra.mxu0 %v528
        %836 = vmatprep.subr.mxu0 0.0
        %837 = vmatpush1.msra.mxu0 %v527
        %838 = vmatprep.subr.mxu0 0.0
        %839 = vmatpush1.msra.mxu0 %v526
        %840 = vmatprep.subr.mxu0 0.0
        %841 = vmatpush1.msra.mxu0 %v525
        %842 = vmatprep.subr.mxu0 0.0
        %843 = vmatpush1.msra.mxu0 %v524
        %844 = vmatprep.subr.mxu0 0.0
        %845 = vmatpush1.msra.mxu0 %v523
        %846 = vmatprep.subr.mxu0 0.0
        %847 = vmatpush2.msra.mxu0 0.0
        %848 = vmatprep.subr.mxu0 0.0
        %849 = vmatpush2.msra.mxu0 0.0
        %850 = vmatprep.subr.mxu0 0.0
        %851 = vmatpush2.msra.mxu0 0.0
        %852 = vmatprep.subr.mxu0 0.0
        %853 = vmatpush2.msra.mxu0 0.0
        %854 = vmatprep.subr.mxu0 0.0
        %855 = vmatpush2.msra.mxu0 0.0
        %856 = vmatprep.subr.mxu0 0.0
        %857 = vmatpush2.msra.mxu0 0.0
        %858 = vmatprep.subr.mxu0 0.0
        %859 = vmatpush2.msra.mxu0 0.0
        %860 = vmatprep.subr.mxu0 0.0
        %861 = vmatpush2.msra.mxu0 0.0
        %862 = vmatprep.subr.mxu0 0.0
        %863 = vmatpush2.msra.mxu0 0.0
        %864 = vmatprep.subr.mxu0 0.0
        %865 = vmatpush2.msra.mxu0 0.0
        %866 = vmatprep.subr.mxu0 0.0
        %867 = vmatpush2.msra.mxu0 0.0
        %868 = vmatprep.subr.mxu0 0.0
        %869 = vmatpush2.msra.mxu0 0.0
        %870 = vmatprep.subr.mxu0 0.0
        %871 = vmatpush2.msra.mxu0 0.0
        %872 = vmatprep.subr.mxu0 0.0
        %873 = vmatpush2.msra.mxu0 0.0
        %874 = vmatprep.subr.mxu0 0.0
        %875 = vmatpush2.msra.mxu0 0.0
        %876 = vmatprep.subr.mxu0 0.0
        %877 = vmatpush2.msra.mxu0 0.0
        %878 = vmatprep.mubr.f32.mxu0 0.0
        %879 = vmatmul.mubr.f32.gmra.mxu0 %v813
        %v880 = vpop.f32.mrf.mxu0
        %v881 = vadd.f32 0.0, %v880
        %v882 = vpop.f32.mrf.mxu0
        %883 = vdwg.mxu0
        %v884 = vmul.f32 %v807, 0.9
        %v885 = vrot.slane %v515, 3
        %v886 = vrot.slane %v520, 2
        %v887 = vsel %vm620, %v886, %v885
        %v889 = vadd.f32 %v884, %v887
        %v890 = vadd.f32 %v889, %v881
        %v891 = vmul.f32 %v807, %v807
        %v892 = vmul.f32 %v891, %v807
        %v893 = vmul.f32 %v892, 0.0001
        %v894 = vsub.f32 %v890, %v893
        %v895 = vmax.f32 %v894, -100.0
        %v896 = vmin.f32 %v895, 100.0
        %v897 = vxor.u32 %v896, 2147483648
        %v898 = vmul.f32 %v897, 1.442695
        %v899 = vpow.pop %v898
        %v900 = vadd.f32 %v899, 1.0
        %v901 = vrcp.pop %v900
        %v902 = vmul.f32 1.0, %v901
        %903 = vmatprep.subr.mxu0 0.0
        %904 = vmatpush1.msra.mxu0 %v538
        %905 = vmatprep.subr.mxu0 0.0
        %906 = vmatpush1.msra.mxu0 %v537
        %907 = vmatprep.subr.mxu0 0.0
        %908 = vmatpush1.msra.mxu0 %v536
        %909 = vmatprep.subr.mxu0 0.0
        %910 = vmatpush1.msra.mxu0 %v535
        %911 = vmatprep.subr.mxu0 0.0
        %912 = vmatpush1.msra.mxu0 %v534
        %913 = vmatprep.subr.mxu0 0.0
        %914 = vmatpush1.msra.mxu0 %v533
        %915 = vmatprep.subr.mxu0 0.0
        %916 = vmatpush1.msra.mxu0 %v532
        %917 = vmatprep.subr.mxu0 0.0
        %918 = vmatpush1.msra.mxu0 %v531
        %919 = vmatprep.subr.mxu0 0.0
        %920 = vmatpush1.msra.mxu0 %v530
        %921 = vmatprep.subr.mxu0 0.0
        %922 = vmatpush1.msra.mxu0 %v529
        %923 = vmatprep.subr.mxu0 0.0
        %924 = vmatpush1.msra.mxu0 %v528
        %925 = vmatprep.subr.mxu0 0.0
        %926 = vmatpush1.msra.mxu0 %v527
        %927 = vmatprep.subr.mxu0 0.0
        %928 = vmatpush1.msra.mxu0 %v526
        %929 = vmatprep.subr.mxu0 0.0
        %930 = vmatpush1.msra.mxu0 %v525
        %931 = vmatprep.subr.mxu0 0.0
        %932 = vmatpush1.msra.mxu0 %v524
        %933 = vmatprep.subr.mxu0 0.0
        %934 = vmatpush1.msra.mxu0 %v523
        %935 = vmatprep.subr.mxu0 0.0
        %936 = vmatpush2.msra.mxu0 0.0
        %937 = vmatprep.subr.mxu0 0.0
        %938 = vmatpush2.msra.mxu0 0.0
        %939 = vmatprep.subr.mxu0 0.0
        %940 = vmatpush2.msra.mxu0 0.0
        %941 = vmatprep.subr.mxu0 0.0
        %942 = vmatpush2.msra.mxu0 0.0
        %943 = vmatprep.subr.mxu0 0.0
        %944 = vmatpush2.msra.mxu0 0.0
        %945 = vmatprep.subr.mxu0 0.0
        %946 = vmatpush2.msra.mxu0 0.0
        %947 = vmatprep.subr.mxu0 0.0
        %948 = vmatpush2.msra.mxu0 0.0
        %949 = vmatprep.subr.mxu0 0.0
        %950 = vmatpush2.msra.mxu0 0.0
        %951 = vmatprep.subr.mxu0 0.0
        %952 = vmatpush2.msra.mxu0 0.0
        %953 = vmatprep.subr.mxu0 0.0
        %954 = vmatpush2.msra.mxu0 0.0
        %955 = vmatprep.subr.mxu0 0.0
        %956 = vmatpush2.msra.mxu0 0.0
        %957 = vmatprep.subr.mxu0 0.0
        %958 = vmatpush2.msra.mxu0 0.0
        %959 = vmatprep.subr.mxu0 0.0
        %960 = vmatpush2.msra.mxu0 0.0
        %961 = vmatprep.subr.mxu0 0.0
        %962 = vmatpush2.msra.mxu0 0.0
        %963 = vmatprep.subr.mxu0 0.0
        %964 = vmatpush2.msra.mxu0 0.0
        %965 = vmatprep.subr.mxu0 0.0
        %966 = vmatpush2.msra.mxu0 0.0
        %967 = vmatprep.mubr.f32.mxu0 0.0
        %968 = vmatmul.mubr.f32.gmra.mxu0 %v902
        %v969 = vpop.f32.mrf.mxu0
        %v970 = vadd.f32 0.0, %v969
        %v971 = vpop.f32.mrf.mxu0
        %972 = vdwg.mxu0
        %v973 = vmul.f32 %v896, 0.9
        %v974 = vrot.slane %v515, 4
        %v975 = vrot.slane %v520, 3
        %v976 = vsel %vm620, %v975, %v974
        %v978 = vadd.f32 %v973, %v976
        %v979 = vadd.f32 %v978, %v970
        %v980 = vmul.f32 %v896, %v896
        %v981 = vmul.f32 %v980, %v896
        %v982 = vmul.f32 %v981, 0.0001
        %v983 = vsub.f32 %v979, %v982
        %v984 = vmax.f32 %v983, -100.0
        %v985 = vmin.f32 %v984, 100.0
        %v986 = vxor.u32 %v985, 2147483648
        %v987 = vmul.f32 %v986, 1.442695
        %v988 = vpow.pop %v987
        %v989 = vadd.f32 %v988, 1.0
        %v990 = vrcp.pop %v989
        %v991 = vmul.f32 1.0, %v990
        %992 = vmatprep.subr.mxu0 0.0
        %993 = vmatpush1.msra.mxu0 %v538
        %994 = vmatprep.subr.mxu0 0.0
        %995 = vmatpush1.msra.mxu0 %v537
        %996 = vmatprep.subr.mxu0 0.0
        %997 = vmatpush1.msra.mxu0 %v536
        %998 = vmatprep.subr.mxu0 0.0
        %999 = vmatpush1.msra.mxu0 %v535
        %1000 = vmatprep.subr.mxu0 0.0
        %1001 = vmatpush1.msra.mxu0 %v534
        %1002 = vmatprep.subr.mxu0 0.0
        %1003 = vmatpush1.msra.mxu0 %v533
        %1004 = vmatprep.subr.mxu0 0.0
        %1005 = vmatpush1.msra.mxu0 %v532
        %1006 = vmatprep.subr.mxu0 0.0
        %1007 = vmatpush1.msra.mxu0 %v531
        %1008 = vmatprep.subr.mxu0 0.0
        %1009 = vmatpush1.msra.mxu0 %v530
        %1010 = vmatprep.subr.mxu0 0.0
        %1011 = vmatpush1.msra.mxu0 %v529
        %1012 = vmatprep.subr.mxu0 0.0
        %1013 = vmatpush1.msra.mxu0 %v528
        %1014 = vmatprep.subr.mxu0 0.0
        %1015 = vmatpush1.msra.mxu0 %v527
        %1016 = vmatprep.subr.mxu0 0.0
        %1017 = vmatpush1.msra.mxu0 %v526
        %1018 = vmatprep.subr.mxu0 0.0
        %1019 = vmatpush1.msra.mxu0 %v525
        %1020 = vmatprep.subr.mxu0 0.0
        %1021 = vmatpush1.msra.mxu0 %v524
        %1022 = vmatprep.subr.mxu0 0.0
        %1023 = vmatpush1.msra.mxu0 %v523
        %1024 = vmatprep.subr.mxu0 0.0
        %1025 = vmatpush2.msra.mxu0 0.0
        %1026 = vmatprep.subr.mxu0 0.0
        %1027 = vmatpush2.msra.mxu0 0.0
        %1028 = vmatprep.subr.mxu0 0.0
        %1029 = vmatpush2.msra.mxu0 0.0
        %1030 = vmatprep.subr.mxu0 0.0
        %1031 = vmatpush2.msra.mxu0 0.0
        %1032 = vmatprep.subr.mxu0 0.0
        %1033 = vmatpush2.msra.mxu0 0.0
        %1034 = vmatprep.subr.mxu0 0.0
        %1035 = vmatpush2.msra.mxu0 0.0
        %1036 = vmatprep.subr.mxu0 0.0
        %1037 = vmatpush2.msra.mxu0 0.0
        %1038 = vmatprep.subr.mxu0 0.0
        %1039 = vmatpush2.msra.mxu0 0.0
        %1040 = vmatprep.subr.mxu0 0.0
        %1041 = vmatpush2.msra.mxu0 0.0
        %1042 = vmatprep.subr.mxu0 0.0
        %1043 = vmatpush2.msra.mxu0 0.0
        %1044 = vmatprep.subr.mxu0 0.0
        %1045 = vmatpush2.msra.mxu0 0.0
        %1046 = vmatprep.subr.mxu0 0.0
        %1047 = vmatpush2.msra.mxu0 0.0
        %1048 = vmatprep.subr.mxu0 0.0
        %1049 = vmatpush2.msra.mxu0 0.0
        %1050 = vmatprep.subr.mxu0 0.0
        %1051 = vmatpush2.msra.mxu0 0.0
        %1052 = vmatprep.subr.mxu0 0.0
        %1053 = vmatpush2.msra.mxu0 0.0
        %1054 = vmatprep.subr.mxu0 0.0
        %1055 = vmatpush2.msra.mxu0 0.0
        %1056 = vmatprep.mubr.f32.mxu0 0.0
        %1057 = vmatmul.mubr.f32.gmra.mxu0 %v991
        %v1058 = vpop.f32.mrf.mxu0
        %v1059 = vadd.f32 0.0, %v1058
        %v1060 = vpop.f32.mrf.mxu0
        %1061 = vdwg.mxu0
        %v1062 = vmul.f32 %v985, 0.9
        %v1063 = vrot.slane %v515, 5
        %v1064 = vrot.slane %v520, 4
        %v1065 = vsel %vm620, %v1064, %v1063
        %v1067 = vadd.f32 %v1062, %v1065
        %v1068 = vadd.f32 %v1067, %v1059
        %v1069 = vmul.f32 %v985, %v985
        %v1070 = vmul.f32 %v1069, %v985
        %v1071 = vmul.f32 %v1070, 0.0001
        %v1072 = vsub.f32 %v1068, %v1071
        %v1073 = vmax.f32 %v1072, -100.0
        %v1074 = vmin.f32 %v1073, 100.0
        %v1075 = vxor.u32 %v1074, 2147483648
        %v1076 = vmul.f32 %v1075, 1.442695
        %v1077 = vpow.pop %v1076
        %v1078 = vadd.f32 %v1077, 1.0
        %v1079 = vrcp.pop %v1078
        %v1080 = vmul.f32 1.0, %v1079
        %1081 = vmatprep.subr.mxu0 0.0
        %1082 = vmatpush1.msra.mxu0 %v538
        %1083 = vmatprep.subr.mxu0 0.0
        %1084 = vmatpush1.msra.mxu0 %v537
        %1085 = vmatprep.subr.mxu0 0.0
        %1086 = vmatpush1.msra.mxu0 %v536
        %1087 = vmatprep.subr.mxu0 0.0
        %1088 = vmatpush1.msra.mxu0 %v535
        %1089 = vmatprep.subr.mxu0 0.0
        %1090 = vmatpush1.msra.mxu0 %v534
        %1091 = vmatprep.subr.mxu0 0.0
        %1092 = vmatpush1.msra.mxu0 %v533
        %1093 = vmatprep.subr.mxu0 0.0
        %1094 = vmatpush1.msra.mxu0 %v532
        %1095 = vmatprep.subr.mxu0 0.0
        %1096 = vmatpush1.msra.mxu0 %v531
        %1097 = vmatprep.subr.mxu0 0.0
        %1098 = vmatpush1.msra.mxu0 %v530
        %1099 = vmatprep.subr.mxu0 0.0
        %1100 = vmatpush1.msra.mxu0 %v529
        %1101 = vmatprep.subr.mxu0 0.0
        %1102 = vmatpush1.msra.mxu0 %v528
        %1103 = vmatprep.subr.mxu0 0.0
        %1104 = vmatpush1.msra.mxu0 %v527
        %1105 = vmatprep.subr.mxu0 0.0
        %1106 = vmatpush1.msra.mxu0 %v526
        %1107 = vmatprep.subr.mxu0 0.0
        %1108 = vmatpush1.msra.mxu0 %v525
        %1109 = vmatprep.subr.mxu0 0.0
        %1110 = vmatpush1.msra.mxu0 %v524
        %1111 = vmatprep.subr.mxu0 0.0
        %1112 = vmatpush1.msra.mxu0 %v523
        %1113 = vmatprep.subr.mxu0 0.0
        %1114 = vmatpush2.msra.mxu0 0.0
        %1115 = vmatprep.subr.mxu0 0.0
        %1116 = vmatpush2.msra.mxu0 0.0
        %1117 = vmatprep.subr.mxu0 0.0
        %1118 = vmatpush2.msra.mxu0 0.0
        %1119 = vmatprep.subr.mxu0 0.0
        %1120 = vmatpush2.msra.mxu0 0.0
        %1121 = vmatprep.subr.mxu0 0.0
        %1122 = vmatpush2.msra.mxu0 0.0
        %1123 = vmatprep.subr.mxu0 0.0
        %1124 = vmatpush2.msra.mxu0 0.0
        %1125 = vmatprep.subr.mxu0 0.0
        %1126 = vmatpush2.msra.mxu0 0.0
        %1127 = vmatprep.subr.mxu0 0.0
        %1128 = vmatpush2.msra.mxu0 0.0
        %1129 = vmatprep.subr.mxu0 0.0
        %1130 = vmatpush2.msra.mxu0 0.0
        %1131 = vmatprep.subr.mxu0 0.0
        %1132 = vmatpush2.msra.mxu0 0.0
        %1133 = vmatprep.subr.mxu0 0.0
        %1134 = vmatpush2.msra.mxu0 0.0
        %1135 = vmatprep.subr.mxu0 0.0
        %1136 = vmatpush2.msra.mxu0 0.0
        %1137 = vmatprep.subr.mxu0 0.0
        %1138 = vmatpush2.msra.mxu0 0.0
        %1139 = vmatprep.subr.mxu0 0.0
        %1140 = vmatpush2.msra.mxu0 0.0
        %1141 = vmatprep.subr.mxu0 0.0
        %1142 = vmatpush2.msra.mxu0 0.0
        %1143 = vmatprep.subr.mxu0 0.0
        %1144 = vmatpush2.msra.mxu0 0.0
        %1145 = vmatprep.mubr.f32.mxu0 0.0
        %1146 = vmatmul.mubr.f32.gmra.mxu0 %v1080
        %v1147 = vpop.f32.mrf.mxu0
        %v1148 = vadd.f32 0.0, %v1147
        %v1149 = vpop.f32.mrf.mxu0
        %1150 = vdwg.mxu0
        %v1151 = vmul.f32 %v1074, 0.9
        %v1152 = vrot.slane %v515, 6
        %v1153 = vrot.slane %v520, 5
        %v1154 = vsel %vm620, %v1153, %v1152
        %v1156 = vadd.f32 %v1151, %v1154
        %v1157 = vadd.f32 %v1156, %v1148
        %v1158 = vmul.f32 %v1074, %v1074
        %v1159 = vmul.f32 %v1158, %v1074
        %v1160 = vmul.f32 %v1159, 0.0001
        %v1161 = vsub.f32 %v1157, %v1160
        %v1162 = vmax.f32 %v1161, -100.0
        %v1163 = vmin.f32 %v1162, 100.0
        %v1164 = vxor.u32 %v1163, 2147483648
        %v1165 = vmul.f32 %v1164, 1.442695
        %v1166 = vpow.pop %v1165
        %v1167 = vadd.f32 %v1166, 1.0
        %v1168 = vrcp.pop %v1167
        %v1169 = vmul.f32 1.0, %v1168
        %1170 = vmatprep.subr.mxu0 0.0
        %1171 = vmatpush1.msra.mxu0 %v538
        %1172 = vmatprep.subr.mxu0 0.0
        %1173 = vmatpush1.msra.mxu0 %v537
        %1174 = vmatprep.subr.mxu0 0.0
        %1175 = vmatpush1.msra.mxu0 %v536
        %1176 = vmatprep.subr.mxu0 0.0
        %1177 = vmatpush1.msra.mxu0 %v535
        %1178 = vmatprep.subr.mxu0 0.0
        %1179 = vmatpush1.msra.mxu0 %v534
        %1180 = vmatprep.subr.mxu0 0.0
        %1181 = vmatpush1.msra.mxu0 %v533
        %1182 = vmatprep.subr.mxu0 0.0
        %1183 = vmatpush1.msra.mxu0 %v532
        %1184 = vmatprep.subr.mxu0 0.0
        %1185 = vmatpush1.msra.mxu0 %v531
        %1186 = vmatprep.subr.mxu0 0.0
        %1187 = vmatpush1.msra.mxu0 %v530
        %1188 = vmatprep.subr.mxu0 0.0
        %1189 = vmatpush1.msra.mxu0 %v529
        %1190 = vmatprep.subr.mxu0 0.0
        %1191 = vmatpush1.msra.mxu0 %v528
        %1192 = vmatprep.subr.mxu0 0.0
        %1193 = vmatpush1.msra.mxu0 %v527
        %1194 = vmatprep.subr.mxu0 0.0
        %1195 = vmatpush1.msra.mxu0 %v526
        %1196 = vmatprep.subr.mxu0 0.0
        %1197 = vmatpush1.msra.mxu0 %v525
        %1198 = vmatprep.subr.mxu0 0.0
        %1199 = vmatpush1.msra.mxu0 %v524
        %1200 = vmatprep.subr.mxu0 0.0
        %1201 = vmatpush1.msra.mxu0 %v523
        %1202 = vmatprep.subr.mxu0 0.0
        %1203 = vmatpush2.msra.mxu0 0.0
        %1204 = vmatprep.subr.mxu0 0.0
        %1205 = vmatpush2.msra.mxu0 0.0
        %1206 = vmatprep.subr.mxu0 0.0
        %1207 = vmatpush2.msra.mxu0 0.0
        %1208 = vmatprep.subr.mxu0 0.0
        %1209 = vmatpush2.msra.mxu0 0.0
        %1210 = vmatprep.subr.mxu0 0.0
        %1211 = vmatpush2.msra.mxu0 0.0
        %1212 = vmatprep.subr.mxu0 0.0
        %1213 = vmatpush2.msra.mxu0 0.0
        %1214 = vmatprep.subr.mxu0 0.0
        %1215 = vmatpush2.msra.mxu0 0.0
        %1216 = vmatprep.subr.mxu0 0.0
        %1217 = vmatpush2.msra.mxu0 0.0
        %1218 = vmatprep.subr.mxu0 0.0
        %1219 = vmatpush2.msra.mxu0 0.0
        %1220 = vmatprep.subr.mxu0 0.0
        %1221 = vmatpush2.msra.mxu0 0.0
        %1222 = vmatprep.subr.mxu0 0.0
        %1223 = vmatpush2.msra.mxu0 0.0
        %1224 = vmatprep.subr.mxu0 0.0
        %1225 = vmatpush2.msra.mxu0 0.0
        %1226 = vmatprep.subr.mxu0 0.0
        %1227 = vmatpush2.msra.mxu0 0.0
        %1228 = vmatprep.subr.mxu0 0.0
        %1229 = vmatpush2.msra.mxu0 0.0
        %1230 = vmatprep.subr.mxu0 0.0
        %1231 = vmatpush2.msra.mxu0 0.0
        %1232 = vmatprep.subr.mxu0 0.0
        %1233 = vmatpush2.msra.mxu0 0.0
        %1234 = vmatprep.mubr.f32.mxu0 0.0
        %1235 = vmatmul.mubr.f32.gmra.mxu0 %v1169
        %v1236 = vpop.f32.mrf.mxu0
        %v1237 = vadd.f32 0.0, %v1236
        %v1238 = vpop.f32.mrf.mxu0
        %1239 = vdwg.mxu0
        %v1240 = vmul.f32 %v1163, 0.9
        %v1241 = vrot.slane %v515, 7
        %v1242 = vrot.slane %v520, 6
        %v1243 = vsel %vm620, %v1242, %v1241
        %v1245 = vadd.f32 %v1240, %v1243
        %v1246 = vadd.f32 %v1245, %v1237
        %v1247 = vmul.f32 %v1163, %v1163
        %v1248 = vmul.f32 %v1247, %v1163
        %v1249 = vmul.f32 %v1248, 0.0001
        %v1250 = vsub.f32 %v1246, %v1249
        %v1251 = vmax.f32 %v1250, -100.0
        %v1252 = vmin.f32 %v1251, 100.0
        %v1253 = vxor.u32 %v1252, 2147483648
        %v1254 = vmul.f32 %v1253, 1.442695
        %v1255 = vpow.pop %v1254
        %v1256 = vadd.f32 %v1255, 1.0
        %v1257 = vrcp.pop %v1256
        %v1258 = vmul.f32 1.0, %v1257
        %1259 = vst [vmem:[#allocation2] sm:$0x3] %v1252
        %v1262 = vunpack.c.l.s4 1966171168
        %v1263 = vunpack.c.0.s8 %v1262
        %v1264 = vlaneseq
        %v1265 = vshrl.u32 %v1264, 7
        %v1266 = vsub.s32 %v1263, %v1265
        %v1267 = vrot.slane %v630, %v1266
        %v1268 = vcombine.high %v1267, %v1267
        %v1270 = vunpack.c.l.s4 1966171168
        %v1271 = vunpack.c.0.s8 %v1270
        %v1272 = vlaneseq
        %v1273 = vshrl.u32 %v1272, 7
        %v1274 = vsub.s32 %v1271, %v1273
        %v1275 = vrot.slane %v1267, %v1274
        %v1277 = vunpack.c.l.s4 1966171168
        %v1278 = vunpack.c.0.s8 %v1277
        %v1279 = vlaneseq
        %v1280 = vshrl.u32 %v1279, 7
        %v1281 = vsub.s32 %v1278, %v1280
        %v1282 = vrot.slane %v1268, %v1281
        %v1287 = vunpack.c.l.s4 1966171168
        %v1288 = vunpack.c.0.s8 %v1287
        %v1289 = vlaneseq
        %v1290 = vshrl.u32 %v1289, 7
        %v1291 = vsub.s32 %v1288, %v1290
        %v1292 = vrot.slane %v718, %v1291
        %v1293 = vcombine.high %v1292, %v1292
        %v1295 = vunpack.c.l.s4 1966171168
        %v1296 = vunpack.c.0.s8 %v1295
        %v1297 = vlaneseq
        %v1298 = vshrl.u32 %v1297, 7
        %v1299 = vsub.s32 %v1296, %v1298
        %v1300 = vrot.slane %v1292, %v1299
        %v1302 = vunpack.c.l.s4 1966171168
        %v1303 = vunpack.c.0.s8 %v1302
        %v1304 = vlaneseq
        %v1305 = vshrl.u32 %v1304, 7
        %v1306 = vsub.s32 %v1303, %v1305
        %v1307 = vrot.slane %v1293, %v1306
        %v1310 = vunpack.c.l.s4 1966171168
        %v1311 = vunpack.c.0.s8 %v1310
        %v1312 = vlaneseq
        %v1313 = vshrl.u32 %v1312, 7
        %v1314 = vsub.s32 %v1311, %v1313
        %v1315 = vrot.slane %v807, %v1314
        %v1316 = vcombine.high %v1315, %v1315
        %v1318 = vunpack.c.l.s4 1966171168
        %v1319 = vunpack.c.0.s8 %v1318
        %v1320 = vlaneseq
        %v1321 = vshrl.u32 %v1320, 7
        %v1322 = vsub.s32 %v1319, %v1321
        %v1323 = vrot.slane %v1315, %v1322
        %v1325 = vunpack.c.l.s4 1966171168
        %v1326 = vunpack.c.0.s8 %v1325
        %v1327 = vlaneseq
        %v1328 = vshrl.u32 %v1327, 7
        %v1329 = vsub.s32 %v1326, %v1328
        %v1330 = vrot.slane %v1316, %v1329
        %v1333 = vunpack.c.l.s4 1966171168
        %v1334 = vunpack.c.0.s8 %v1333
        %v1335 = vlaneseq
        %v1336 = vshrl.u32 %v1335, 7
        %v1337 = vsub.s32 %v1334, %v1336
        %v1338 = vrot.slane %v896, %v1337
        %v1339 = vcombine.high %v1338, %v1338
        %v1341 = vunpack.c.l.s4 1966171168
        %v1342 = vunpack.c.0.s8 %v1341
        %v1343 = vlaneseq
        %v1344 = vshrl.u32 %v1343, 7
        %v1345 = vsub.s32 %v1342, %v1344
        %v1346 = vrot.slane %v1338, %v1345
        %v1348 = vunpack.c.l.s4 1966171168
        %v1349 = vunpack.c.0.s8 %v1348
        %v1350 = vlaneseq
        %v1351 = vshrl.u32 %v1350, 7
        %v1352 = vsub.s32 %v1349, %v1351
        %v1353 = vrot.slane %v1339, %v1352
        %v1356 = vunpack.c.l.s4 1966171168
        %v1357 = vunpack.c.0.s8 %v1356
        %v1358 = vlaneseq
        %v1359 = vshrl.u32 %v1358, 7
        %v1360 = vsub.s32 %v1357, %v1359
        %v1361 = vrot.slane %v985, %v1360
        %v1362 = vcombine.high %v1361, %v1361
        %v1364 = vunpack.c.l.s4 1966171168
        %v1365 = vunpack.c.0.s8 %v1364
        %v1366 = vlaneseq
        %v1367 = vshrl.u32 %v1366, 7
        %v1368 = vsub.s32 %v1365, %v1367
        %v1369 = vrot.slane %v1361, %v1368
        %v1371 = vunpack.c.l.s4 1966171168
        %v1372 = vunpack.c.0.s8 %v1371
        %v1373 = vlaneseq
        %v1374 = vshrl.u32 %v1373, 7
        %v1375 = vsub.s32 %v1372, %v1374
        %v1376 = vrot.slane %v1362, %v1375
        %v1379 = vunpack.c.l.s4 1966171168
        %v1380 = vunpack.c.0.s8 %v1379
        %v1381 = vlaneseq
        %v1382 = vshrl.u32 %v1381, 7
        %v1383 = vsub.s32 %v1380, %v1382
        %v1384 = vrot.slane %v1074, %v1383
        %v1385 = vcombine.high %v1384, %v1384
        %v1387 = vunpack.c.l.s4 1966171168
        %v1388 = vunpack.c.0.s8 %v1387
        %v1389 = vlaneseq
        %v1390 = vshrl.u32 %v1389, 7
        %v1391 = vsub.s32 %v1388, %v1390
        %v1392 = vrot.slane %v1384, %v1391
        %v1394 = vunpack.c.l.s4 1966171168
        %v1395 = vunpack.c.0.s8 %v1394
        %v1396 = vlaneseq
        %v1397 = vshrl.u32 %v1396, 7
        %v1398 = vsub.s32 %v1395, %v1397
        %v1399 = vrot.slane %v1385, %v1398
        %v1402 = vunpack.c.l.s4 1966171168
        %v1403 = vunpack.c.0.s8 %v1402
        %v1404 = vlaneseq
        %v1405 = vshrl.u32 %v1404, 7
        %v1406 = vsub.s32 %v1403, %v1405
        %v1407 = vrot.slane %v1163, %v1406
        %v1408 = vcombine.high %v1407, %v1407
        %v1410 = vunpack.c.l.s4 1966171168
        %v1411 = vunpack.c.0.s8 %v1410
        %v1412 = vlaneseq
        %v1413 = vshrl.u32 %v1412, 7
        %v1414 = vsub.s32 %v1411, %v1413
        %v1415 = vrot.slane %v1407, %v1414
        %v1417 = vunpack.c.l.s4 1966171168
        %v1418 = vunpack.c.0.s8 %v1417
        %v1419 = vlaneseq
        %v1420 = vshrl.u32 %v1419, 7
        %v1421 = vsub.s32 %v1418, %v1420
        %v1422 = vrot.slane %v1408, %v1421
        %v1425 = vunpack.c.l.s4 1966171168
        %v1426 = vunpack.c.0.s8 %v1425
        %v1427 = vlaneseq
        %v1428 = vshrl.u32 %v1427, 7
        %v1429 = vsub.s32 %v1426, %v1428
        %v1430 = vrot.slane %v1252, %v1429
        %v1431 = vcombine.high %v1430, %v1430
        %v1433 = vunpack.c.l.s4 1966171168
        %v1434 = vunpack.c.0.s8 %v1433
        %v1435 = vlaneseq
        %v1436 = vshrl.u32 %v1435, 7
        %v1437 = vsub.s32 %v1434, %v1436
        %v1438 = vrot.slane %v1430, %v1437
        %v1440 = vunpack.c.l.s4 1966171168
        %v1441 = vunpack.c.0.s8 %v1440
        %v1442 = vlaneseq
        %v1443 = vshrl.u32 %v1442, 7
        %v1444 = vsub.s32 %v1441, %v1443
        %v1445 = vrot.slane %v1431, %v1444
        %v1446 = vlaneseq
        %v1447 = vshrl.u32 %v1446, 7
        %v1448 = vsub.s32 0, %v1447
        %v1449 = vrot.slane %v1300, %v1448
        %v1450 = vlaneseq
        %v1451 = vshrl.u32 %v1450, 7
        %v1452 = vsub.s32 0, %v1451
        %v1453 = vrot.slane %v1307, %v1452
        %v1456 = vlaneseq
        %v1457 = vshrl.u32 %v1456, 7
        %v1458 = vsub.s32 0, %v1457
        %v1459 = vrot.slane %v1323, %v1458
        %v1460 = vlaneseq
        %v1461 = vshrl.u32 %v1460, 7
        %v1462 = vsub.s32 0, %v1461
        %v1463 = vrot.slane %v1330, %v1462
        %v1466 = vlaneseq
        %v1467 = vshrl.u32 %v1466, 7
        %v1468 = vsub.s32 0, %v1467
        %v1469 = vrot.slane %v1346, %v1468
        %v1470 = vlaneseq
        %v1471 = vshrl.u32 %v1470, 7
        %v1472 = vsub.s32 0, %v1471
        %v1473 = vrot.slane %v1353, %v1472
        %v1476 = vlaneseq
        %v1477 = vshrl.u32 %v1476, 7
        %v1478 = vsub.s32 0, %v1477
        %v1479 = vrot.slane %v1369, %v1478
        %v1480 = vlaneseq
        %v1481 = vshrl.u32 %v1480, 7
        %v1482 = vsub.s32 0, %v1481
        %v1483 = vrot.slane %v1376, %v1482
        %v1486 = vlaneseq
        %v1487 = vshrl.u32 %v1486, 7
        %v1488 = vsub.s32 0, %v1487
        %v1489 = vrot.slane %v1392, %v1488
        %v1490 = vlaneseq
        %v1491 = vshrl.u32 %v1490, 7
        %v1492 = vsub.s32 0, %v1491
        %v1493 = vrot.slane %v1399, %v1492
        %v1496 = vlaneseq
        %v1497 = vshrl.u32 %v1496, 7
        %v1498 = vsub.s32 0, %v1497
        %v1499 = vrot.slane %v1415, %v1498
        %v1500 = vlaneseq
        %v1501 = vshrl.u32 %v1500, 7
        %v1502 = vsub.s32 0, %v1501
        %v1503 = vrot.slane %v1422, %v1502
        %v1506 = vlaneseq
        %v1507 = vshrl.u32 %v1506, 7
        %v1508 = vsub.s32 0, %v1507
        %v1509 = vrot.slane %v1438, %v1508
        %v1510 = vlaneseq
        %v1511 = vshrl.u32 %v1510, 7
        %v1512 = vsub.s32 0, %v1511
        %v1513 = vrot.slane %v1445, %v1512
        %vm1516 = vcmask 1040384
        %v1517 = vsel %vm1516, %v1275, %v1449
        %v1518 = vsel %vm1516, %v1282, %v1453
        %vm1519 = vcmask 1041408
        %v1520 = vsel %vm1519, %v1517, %v1459
        %v1521 = vsel %vm1519, %v1518, %v1463
        %vm1522 = vcmask 1042432
        %v1523 = vsel %vm1522, %v1520, %v1469
        %v1524 = vsel %vm1522, %v1521, %v1473
        %vm1525 = vcmask 1043456
        %v1526 = vsel %vm1525, %v1523, %v1479
        %v1527 = vsel %vm1525, %v1524, %v1483
        %vm1528 = vcmask 1044480
        %v1529 = vsel %vm1528, %v1526, %v1489
        %v1530 = vsel %vm1528, %v1527, %v1493
        %vm1531 = vcmask 1045504
        %v1532 = vsel %vm1531, %v1529, %v1499
        %v1533 = vsel %vm1531, %v1530, %v1503
        %vm1534 = vcmask 1046528
        %v1535 = vsel %vm1534, %v1532, %v1509
        %v1536 = vsel %vm1534, %v1533, %v1513
        %1537 = vst [vmem:[%s393] sm:$0xff] %v1535
        %1538 = vst [vmem:[%s393 + $0x8] sm:$0xff] %v1536
        %v1541 = vunpack.c.l.s4 1966171168
        %v1542 = vunpack.c.0.s8 %v1541
        %v1543 = vlaneseq
        %v1544 = vshrl.u32 %v1543, 7
        %v1545 = vsub.s32 %v1542, %v1544
        %v1546 = vrot.slane %v636, %v1545
        %v1547 = vcombine.high %v1546, %v1546
        %v1549 = vunpack.c.l.s4 1966171168
        %v1550 = vunpack.c.0.s8 %v1549
        %v1551 = vlaneseq
        %v1552 = vshrl.u32 %v1551, 7
        %v1553 = vsub.s32 %v1550, %v1552
        %v1554 = vrot.slane %v1546, %v1553
        %v1556 = vunpack.c.l.s4 1966171168
        %v1557 = vunpack.c.0.s8 %v1556
        %v1558 = vlaneseq
        %v1559 = vshrl.u32 %v1558, 7
        %v1560 = vsub.s32 %v1557, %v1559
        %v1561 = vrot.slane %v1547, %v1560
        %v1566 = vunpack.c.l.s4 1966171168
        %v1567 = vunpack.c.0.s8 %v1566
        %v1568 = vlaneseq
        %v1569 = vshrl.u32 %v1568, 7
        %v1570 = vsub.s32 %v1567, %v1569
        %v1571 = vrot.slane %v724, %v1570
        %v1572 = vcombine.high %v1571, %v1571
        %v1574 = vunpack.c.l.s4 1966171168
        %v1575 = vunpack.c.0.s8 %v1574
        %v1576 = vlaneseq
        %v1577 = vshrl.u32 %v1576, 7
        %v1578 = vsub.s32 %v1575, %v1577
        %v1579 = vrot.slane %v1571, %v1578
        %v1581 = vunpack.c.l.s4 1966171168
        %v1582 = vunpack.c.0.s8 %v1581
        %v1583 = vlaneseq
        %v1584 = vshrl.u32 %v1583, 7
        %v1585 = vsub.s32 %v1582, %v1584
        %v1586 = vrot.slane %v1572, %v1585
        %v1589 = vunpack.c.l.s4 1966171168
        %v1590 = vunpack.c.0.s8 %v1589
        %v1591 = vlaneseq
        %v1592 = vshrl.u32 %v1591, 7
        %v1593 = vsub.s32 %v1590, %v1592
        %v1594 = vrot.slane %v813, %v1593
        %v1595 = vcombine.high %v1594, %v1594
        %v1597 = vunpack.c.l.s4 1966171168
        %v1598 = vunpack.c.0.s8 %v1597
        %v1599 = vlaneseq
        %v1600 = vshrl.u32 %v1599, 7
        %v1601 = vsub.s32 %v1598, %v1600
        %v1602 = vrot.slane %v1594, %v1601
        %v1604 = vunpack.c.l.s4 1966171168
        %v1605 = vunpack.c.0.s8 %v1604
        %v1606 = vlaneseq
        %v1607 = vshrl.u32 %v1606, 7
        %v1608 = vsub.s32 %v1605, %v1607
        %v1609 = vrot.slane %v1595, %v1608
        %v1612 = vunpack.c.l.s4 1966171168
        %v1613 = vunpack.c.0.s8 %v1612
        %v1614 = vlaneseq
        %v1615 = vshrl.u32 %v1614, 7
        %v1616 = vsub.s32 %v1613, %v1615
        %v1617 = vrot.slane %v902, %v1616
        %v1618 = vcombine.high %v1617, %v1617
        %v1620 = vunpack.c.l.s4 1966171168
        %v1621 = vunpack.c.0.s8 %v1620
        %v1622 = vlaneseq
        %v1623 = vshrl.u32 %v1622, 7
        %v1624 = vsub.s32 %v1621, %v1623
        %v1625 = vrot.slane %v1617, %v1624
        %v1627 = vunpack.c.l.s4 1966171168
        %v1628 = vunpack.c.0.s8 %v1627
        %v1629 = vlaneseq
        %v1630 = vshrl.u32 %v1629, 7
        %v1631 = vsub.s32 %v1628, %v1630
        %v1632 = vrot.slane %v1618, %v1631
        %v1635 = vunpack.c.l.s4 1966171168
        %v1636 = vunpack.c.0.s8 %v1635
        %v1637 = vlaneseq
        %v1638 = vshrl.u32 %v1637, 7
        %v1639 = vsub.s32 %v1636, %v1638
        %v1640 = vrot.slane %v991, %v1639
        %v1641 = vcombine.high %v1640, %v1640
        %v1643 = vunpack.c.l.s4 1966171168
        %v1644 = vunpack.c.0.s8 %v1643
        %v1645 = vlaneseq
        %v1646 = vshrl.u32 %v1645, 7
        %v1647 = vsub.s32 %v1644, %v1646
        %v1648 = vrot.slane %v1640, %v1647
        %v1650 = vunpack.c.l.s4 1966171168
        %v1651 = vunpack.c.0.s8 %v1650
        %v1652 = vlaneseq
        %v1653 = vshrl.u32 %v1652, 7
        %v1654 = vsub.s32 %v1651, %v1653
        %v1655 = vrot.slane %v1641, %v1654
        %v1658 = vunpack.c.l.s4 1966171168
        %v1659 = vunpack.c.0.s8 %v1658
        %v1660 = vlaneseq
        %v1661 = vshrl.u32 %v1660, 7
        %v1662 = vsub.s32 %v1659, %v1661
        %v1663 = vrot.slane %v1080, %v1662
        %v1664 = vcombine.high %v1663, %v1663
        %v1666 = vunpack.c.l.s4 1966171168
        %v1667 = vunpack.c.0.s8 %v1666
        %v1668 = vlaneseq
        %v1669 = vshrl.u32 %v1668, 7
        %v1670 = vsub.s32 %v1667, %v1669
        %v1671 = vrot.slane %v1663, %v1670
        %v1673 = vunpack.c.l.s4 1966171168
        %v1674 = vunpack.c.0.s8 %v1673
        %v1675 = vlaneseq
        %v1676 = vshrl.u32 %v1675, 7
        %v1677 = vsub.s32 %v1674, %v1676
        %v1678 = vrot.slane %v1664, %v1677
        %v1681 = vunpack.c.l.s4 1966171168
        %v1682 = vunpack.c.0.s8 %v1681
        %v1683 = vlaneseq
        %v1684 = vshrl.u32 %v1683, 7
        %v1685 = vsub.s32 %v1682, %v1684
        %v1686 = vrot.slane %v1169, %v1685
        %v1687 = vcombine.high %v1686, %v1686
        %v1689 = vunpack.c.l.s4 1966171168
        %v1690 = vunpack.c.0.s8 %v1689
        %v1691 = vlaneseq
        %v1692 = vshrl.u32 %v1691, 7
        %v1693 = vsub.s32 %v1690, %v1692
        %v1694 = vrot.slane %v1686, %v1693
        %v1696 = vunpack.c.l.s4 1966171168
        %v1697 = vunpack.c.0.s8 %v1696
        %v1698 = vlaneseq
        %v1699 = vshrl.u32 %v1698, 7
        %v1700 = vsub.s32 %v1697, %v1699
        %v1701 = vrot.slane %v1687, %v1700
        %v1704 = vunpack.c.l.s4 1966171168
        %v1705 = vunpack.c.0.s8 %v1704
        %v1706 = vlaneseq
        %v1707 = vshrl.u32 %v1706, 7
        %v1708 = vsub.s32 %v1705, %v1707
        %v1709 = vrot.slane %v1258, %v1708
        %v1710 = vcombine.high %v1709, %v1709
        %v1712 = vunpack.c.l.s4 1966171168
        %v1713 = vunpack.c.0.s8 %v1712
        %v1714 = vlaneseq
        %v1715 = vshrl.u32 %v1714, 7
        %v1716 = vsub.s32 %v1713, %v1715
        %v1717 = vrot.slane %v1709, %v1716
        %v1719 = vunpack.c.l.s4 1966171168
        %v1720 = vunpack.c.0.s8 %v1719
        %v1721 = vlaneseq
        %v1722 = vshrl.u32 %v1721, 7
        %v1723 = vsub.s32 %v1720, %v1722
        %v1724 = vrot.slane %v1710, %v1723
        %v1725 = vlaneseq
        %v1726 = vshrl.u32 %v1725, 7
        %v1727 = vsub.s32 0, %v1726
        %v1728 = vrot.slane %v1579, %v1727
        %v1729 = vlaneseq
        %v1730 = vshrl.u32 %v1729, 7
        %v1731 = vsub.s32 0, %v1730
        %v1732 = vrot.slane %v1586, %v1731
        %v1735 = vlaneseq
        %v1736 = vshrl.u32 %v1735, 7
        %v1737 = vsub.s32 0, %v1736
        %v1738 = vrot.slane %v1602, %v1737
        %v1739 = vlaneseq
        %v1740 = vshrl.u32 %v1739, 7
        %v1741 = vsub.s32 0, %v1740
        %v1742 = vrot.slane %v1609, %v1741
        %v1745 = vlaneseq
        %v1746 = vshrl.u32 %v1745, 7
        %v1747 = vsub.s32 0, %v1746
        %v1748 = vrot.slane %v1625, %v1747
        %v1749 = vlaneseq
        %v1750 = vshrl.u32 %v1749, 7
        %v1751 = vsub.s32 0, %v1750
        %v1752 = vrot.slane %v1632, %v1751
        %v1755 = vlaneseq
        %v1756 = vshrl.u32 %v1755, 7
        %v1757 = vsub.s32 0, %v1756
        %v1758 = vrot.slane %v1648, %v1757
        %v1759 = vlaneseq
        %v1760 = vshrl.u32 %v1759, 7
        %v1761 = vsub.s32 0, %v1760
        %v1762 = vrot.slane %v1655, %v1761
        %v1765 = vlaneseq
        %v1766 = vshrl.u32 %v1765, 7
        %v1767 = vsub.s32 0, %v1766
        %v1768 = vrot.slane %v1671, %v1767
        %v1769 = vlaneseq
        %v1770 = vshrl.u32 %v1769, 7
        %v1771 = vsub.s32 0, %v1770
        %v1772 = vrot.slane %v1678, %v1771
        %v1775 = vlaneseq
        %v1776 = vshrl.u32 %v1775, 7
        %v1777 = vsub.s32 0, %v1776
        %v1778 = vrot.slane %v1694, %v1777
        %v1779 = vlaneseq
        %v1780 = vshrl.u32 %v1779, 7
        %v1781 = vsub.s32 0, %v1780
        %v1782 = vrot.slane %v1701, %v1781
        %v1785 = vlaneseq
        %v1786 = vshrl.u32 %v1785, 7
        %v1787 = vsub.s32 0, %v1786
        %v1788 = vrot.slane %v1717, %v1787
        %v1789 = vlaneseq
        %v1790 = vshrl.u32 %v1789, 7
        %v1791 = vsub.s32 0, %v1790
        %v1792 = vrot.slane %v1724, %v1791
        %v1795 = vsel %vm1516, %v1554, %v1728
        %v1796 = vsel %vm1516, %v1561, %v1732
        %v1797 = vsel %vm1519, %v1795, %v1738
        %v1798 = vsel %vm1519, %v1796, %v1742
        %v1799 = vsel %vm1522, %v1797, %v1748
        %v1800 = vsel %vm1522, %v1798, %v1752
        %v1801 = vsel %vm1525, %v1799, %v1758
        %v1802 = vsel %vm1525, %v1800, %v1762
        %v1803 = vsel %vm1528, %v1801, %v1768
        %v1804 = vsel %vm1528, %v1802, %v1772
        %v1805 = vsel %vm1531, %v1803, %v1778
        %v1806 = vsel %vm1531, %v1804, %v1782
        %v1807 = vsel %vm1534, %v1805, %v1788
        %v1808 = vsel %vm1534, %v1806, %v1792
        %v1809 = vld [vmem:[#allocation11] sm:$0xff]
        %v1810 = vld [vmem:[#allocation11 + $0x8] sm:$0xff]
        %v1811 = vld [vmem:[#allocation11 + $0x10] sm:$0xff]
        %v1812 = vld [vmem:[#allocation11 + $0x18] sm:$0xff]
        %v1813 = vld [vmem:[#allocation11 + $0x20] sm:$0xff]
        %v1814 = vld [vmem:[#allocation11 + $0x28] sm:$0xff]
        %v1815 = vld [vmem:[#allocation11 + $0x30] sm:$0xff]
        %v1816 = vld [vmem:[#allocation11 + $0x38] sm:$0xff]
        %v1817 = vld [vmem:[#allocation11 + $0x40] sm:$0xff]
        %v1818 = vld [vmem:[#allocation11 + $0x48] sm:$0xff]
        %v1819 = vld [vmem:[#allocation11 + $0x50] sm:$0xff]
        %v1820 = vld [vmem:[#allocation11 + $0x58] sm:$0xff]
        %v1821 = vld [vmem:[#allocation11 + $0x60] sm:$0xff]
        %v1822 = vld [vmem:[#allocation11 + $0x68] sm:$0xff]
        %v1823 = vld [vmem:[#allocation11 + $0x70] sm:$0xff]
        %v1824 = vld [vmem:[#allocation11 + $0x78] sm:$0xff]
        %1825 = vmatprep.subr.mxu0 0.0
        %1826 = vmatpush1.msra.mxu0 %v1824
        %1827 = vmatprep.subr.mxu0 0.0
        %1828 = vmatpush1.msra.mxu0 %v1823
        %1829 = vmatprep.subr.mxu0 0.0
        %1830 = vmatpush1.msra.mxu0 %v1822
        %1831 = vmatprep.subr.mxu0 0.0
        %1832 = vmatpush1.msra.mxu0 %v1821
        %1833 = vmatprep.subr.mxu0 0.0
        %1834 = vmatpush1.msra.mxu0 %v1820
        %1835 = vmatprep.subr.mxu0 0.0
        %1836 = vmatpush1.msra.mxu0 %v1819
        %1837 = vmatprep.subr.mxu0 0.0
        %1838 = vmatpush1.msra.mxu0 %v1818
        %1839 = vmatprep.subr.mxu0 0.0
        %1840 = vmatpush1.msra.mxu0 %v1817
        %1841 = vmatprep.subr.mxu0 0.0
        %1842 = vmatpush1.msra.mxu0 %v1816
        %1843 = vmatprep.subr.mxu0 0.0
        %1844 = vmatpush1.msra.mxu0 %v1815
        %1845 = vmatprep.subr.mxu0 0.0
        %1846 = vmatpush1.msra.mxu0 %v1814
        %1847 = vmatprep.subr.mxu0 0.0
        %1848 = vmatpush1.msra.mxu0 %v1813
        %1849 = vmatprep.subr.mxu0 0.0
        %1850 = vmatpush1.msra.mxu0 %v1812
        %1851 = vmatprep.subr.mxu0 0.0
        %1852 = vmatpush1.msra.mxu0 %v1811
        %1853 = vmatprep.subr.mxu0 0.0
        %1854 = vmatpush1.msra.mxu0 %v1810
        %1855 = vmatprep.subr.mxu0 0.0
        %1856 = vmatpush1.msra.mxu0 %v1809
        %1857 = vmatprep.subr.mxu0 0.0
        %1858 = vmatpush2.msra.mxu0 0.0
        %1859 = vmatprep.subr.mxu0 0.0
        %1860 = vmatpush2.msra.mxu0 0.0
        %1861 = vmatprep.subr.mxu0 0.0
        %1862 = vmatpush2.msra.mxu0 0.0
        %1863 = vmatprep.subr.mxu0 0.0
        %1864 = vmatpush2.msra.mxu0 0.0
        %1865 = vmatprep.subr.mxu0 0.0
        %1866 = vmatpush2.msra.mxu0 0.0
        %1867 = vmatprep.subr.mxu0 0.0
        %1868 = vmatpush2.msra.mxu0 0.0
        %1869 = vmatprep.subr.mxu0 0.0
        %1870 = vmatpush2.msra.mxu0 0.0
        %1871 = vmatprep.subr.mxu0 0.0
        %1872 = vmatpush2.msra.mxu0 0.0
        %1873 = vmatprep.subr.mxu0 0.0
        %1874 = vmatpush2.msra.mxu0 0.0
        %1875 = vmatprep.subr.mxu0 0.0
        %1876 = vmatpush2.msra.mxu0 0.0
        %1877 = vmatprep.subr.mxu0 0.0
        %1878 = vmatpush2.msra.mxu0 0.0
        %1879 = vmatprep.subr.mxu0 0.0
        %1880 = vmatpush2.msra.mxu0 0.0
        %1881 = vmatprep.subr.mxu0 0.0
        %1882 = vmatpush2.msra.mxu0 0.0
        %1883 = vmatprep.subr.mxu0 0.0
        %1884 = vmatpush2.msra.mxu0 0.0
        %1885 = vmatprep.subr.mxu0 0.0
        %1886 = vmatpush2.msra.mxu0 0.0
        %1887 = vmatprep.subr.mxu0 0.0
        %1888 = vmatpush2.msra.mxu0 0.0
        %1889 = vmatprep.mubr.f32.mxu0 0.0
        %1890 = vmatmul.mubr.f32.gmra.mxu0 %v1807
        %v1891 = vpop.f32.mrf.mxu0
        %v1892 = vadd.f32 0.0, %v1891
        %v1893 = vpop.f32.mrf.mxu0
        %1894 = vmatprep.mubr.f32.mxu0 0.0
        %1895 = vmatmul.mubr.f32.gmra.mxu0 %v1808
        %v1896 = vpop.f32.mrf.mxu0
        %v1897 = vadd.f32 0.0, %v1896
        %v1898 = vpop.f32.mrf.mxu0
        %1899 = vdwg.mxu0
        %1900 = vst [vmem:[%s386] sm:$0xff] %v1892
        %1901 = vst [vmem:[%s386 + $0x8] sm:$0xff] %v1897
        %s1902 = sand.u32 %s190, 1
        %s1903 = scalar_lea.sflag [#allocation5], %s1902
        %s1904 = sand.u32 %s190, 1
        %s1905 = smul.addr %s1904, 16
        %s1906 = scalar_lea.vmem [#allocation12], %s1905
        %s1907 = sand.u32 %s218, 1
        %s1908 = scalar_lea.sflag [#allocation14], %s1907
        %s1909 = sand.u32 %s218, 1
        %s1910 = smul.addr %s1909, 16
        %s1911 = scalar_lea.vmem [#allocation13], %s1910
        // Predicated region
        $region69: #{tpu_custom_call.1} parent=43 // pred_check
          %p1912 = pneg %p200
        $region70: #{tpu_custom_call.1} parent=43 // pred_check_branch
          %1914 = sbr.rel (%p1912) target = $region72
        $region71: #{tpu_custom_call.1} parent=43 // pred_region
          %s1915 = smul.u32 2, %s34
          %s1917 = ssub.s32 256, 256
          %1918 = vsyncadd %s1903, %s1917
          %s1919 = smul.addr %s1915, 2
          %s1920 = sadd.s32 %s35, %s1919
          %s1921 = smul.addr %s1920, 128
          %s1922 = scalar_lea.hbm %s6, %s1921
          %s1923 = sshll.u32 %s1906, 4
          %s1924 = int_to_ptr.vmem [resolvable:$true] %s1923
          %1929 = dma.vmem_to_hbm [thread:$0]  %s1924, 256, %s1922, %s1903, 128, 256, 8
        $region72: #{tpu_custom_call.1} parent=43 // pred_fallthru
          _
        // Predicated region
        $region73: #{tpu_custom_call.1} parent=43 // pred_check
          %p1930 = pneg %p228
        $region74: #{tpu_custom_call.1} parent=43 // pred_check_branch
          %1932 = sbr.rel (%p1930) target = $region76
        $region75: #{tpu_custom_call.1} parent=43 // pred_region
          %s1933 = smul.u32 2, %s34
          %s1935 = ssub.s32 256, 256
          %1936 = vsyncadd %s1908, %s1935
          %s1937 = smul.addr %s1933, 2
          %s1938 = sadd.s32 %s35, %s1937
          %s1939 = smul.addr %s1938, 128
          %s1940 = scalar_lea.hbm %s7, %s1939
          %s1941 = sshll.u32 %s1911, 4
          %s1942 = int_to_ptr.vmem [resolvable:$true] %s1941
          %1947 = dma.vmem_to_hbm [thread:$0]  %s1942, 256, %s1940, %s1908, 128, 256, 8
        $region76: #{tpu_custom_call.1} parent=43 // pred_fallthru
          _
      $region44: #{tpu_custom_call.1} parent=5 // pred_fallthru
        _
      %p1948 = scmp.le.s32.totalorder 2, %s25
      // Predicated region
      $region77: #{tpu_custom_call.1} parent=5 // pred_check
        %p1949 = pneg %p1948
      $region78: #{tpu_custom_call.1} parent=5 // pred_check_branch
        %1951 = sbr.rel (%p1949) target = $region80
      $region79: #{tpu_custom_call.1} parent=5 // pred_region
        %s1952 = ssub.s32 %s25, 2
        // Predicated region
        $region81: #{tpu_custom_call.1} parent=79 // pred_check
          %p1953 = pneg %p206
        $region82: #{tpu_custom_call.1} parent=79 // pred_check_branch
          %1955 = sbr.rel (%p1953) target = $region84
        $region83: #{tpu_custom_call.1} parent=79 // pred_region
          %s1956 = sand.u32 %s191, 1
          %s1957 = scalar_lea.sflag [#allocation5], %s1956
          %s1958 = sand.u32 %s191, 1
          %s1959 = smul.addr %s1958, 16
          %s1960 = scalar_lea.vmem [#allocation12], %s1959
          %1961 = dma.done %s1957, 256
        $region84: #{tpu_custom_call.1} parent=79 // pred_fallthru
          _
        // Predicated region
        $region85: #{tpu_custom_call.1} parent=79 // pred_check
          %p1962 = pneg %p234
        $region86: #{tpu_custom_call.1} parent=79 // pred_check_branch
          %1964 = sbr.rel (%p1962) target = $region88
        $region87: #{tpu_custom_call.1} parent=79 // pred_region
          %s1965 = sand.u32 %s219, 1
          %s1966 = scalar_lea.sflag [#allocation14], %s1965
          %s1967 = sand.u32 %s219, 1
          %s1968 = smul.addr %s1967, 16
          %s1969 = scalar_lea.vmem [#allocation13], %s1968
          %1970 = dma.done %s1966, 256
        $region88: #{tpu_custom_call.1} parent=79 // pred_fallthru
          _
      $region80: #{tpu_custom_call.1} parent=5 // pred_fallthru
        _
    $region6: #{tpu_custom_call.1} parent=1 // loop_footer
      %s29 = sadd.s32 1, %s25
    $region7: #{tpu_custom_call.1} parent=1 // loop_footer_branch
      %24 = sbr.rel target = $region3
    $region8: #{tpu_custom_call.1} parent=1 // loop_exit
      _
    %1971 = vsyncpa [#allocation4], 1
    %s1972 = scalar_lea.sflag [#allocation4], 1
    %1973 = vsyncpa %s1972, 1
    %1974 = vsyncpa [#allocation7], 1
    %1975 = vsyncpa [#allocation10], 1
    %1976 = vsyncpa [#allocation5], 1
    %s1977 = scalar_lea.sflag [#allocation5], 1
    %1978 = vsyncpa %s1977, 1
    %1979 = vsyncpa [#allocation14], 1
    %s1980 = scalar_lea.sflag [#allocation14], 1
    %1981 = vsyncpa %s1980, 1

</llo_original>
